<compile_context>
chip_gen: v7x
topology: tpu7x:2x2x1
jax: 0.10.0
libtpu: 0.0.40
codegen_flags: <defaults>
</compile_context>

<pallas_src>
import functools

import jax
import jax.numpy as jnp
from jax.experimental import pallas as pl
from jax.experimental.pallas import tpu as pltpu

# Module constants (PyTorch globals N_EXPERTS / LATENT_DIM / HIDDEN_DIM).
N_EXPERTS = 4
LATENT_DIM = 32
HIDDEN_DIM = 64
TOP_K = 2


def sparse_moe_kernel(z_ref, wg_ref, bg_ref, w1c_ref, b1c_ref, w2c_ref, b2_ref,
                      sel_ref, o_ref, *, n_experts, k):
    z = z_ref[...].astype(jnp.float32)                          # [tb, L]

    # --- gate logits + un-normalized softmax numerators (f32) ---------------
    logits = jnp.dot(z, wg_ref[...], preferred_element_type=jnp.float32)
    logits = logits + bg_ref[...]                               # [tb, E]
    m = jnp.max(logits, axis=-1, keepdims=True)
    e = jnp.exp(logits - m)                                     # [tb, E]

    # --- top-k rank mask on e (monotone with softmax -> identical selection) -
    # rank_i = #{j : e_j > e_i  or  (e_j == e_i and j < i)}; ties break toward
    # the lower expert index exactly like torch.topk.  Pure 2-D elementwise
    # ops, no lane reductions / concatenates.
    e_iota = jax.lax.broadcasted_iota(jnp.int32, e.shape, 1)    # [tb, E]
    rank = jnp.zeros_like(e)
    for j in range(n_experts):
        ej = e[:, j:j + 1]                                      # [tb, 1]
        gt = (ej > e).astype(jnp.float32)    # expert j beats i (j > i, strict)
        ge = (ej >= e).astype(jnp.float32)   # expert j beats i (j < i, tie wins)
        rank = rank + jnp.where(e_iota > j, ge, jnp.where(e_iota < j, gt, 0.0))

    # Exact divide only for the final gate weights (off the ranking path);
    # NOT renormalized over the selected k (matches the PyTorch module).
    denom = jnp.sum(e, axis=-1, keepdims=True)
    gw = jnp.where(rank < float(k), e, 0.0) / denom             # [tb, E]

    # --- broadcast gate weights across each expert's hidden block -----------
    # gw_b[:, e*H + h] = gw[:, e] via one native bf16 MXU matmul with the
    # hoisted one-hot selection matrix.
    gw_b = jnp.dot(gw.astype(sel_ref.dtype), sel_ref[...],
                   preferred_element_type=jnp.float32)          # [tb, E*H]

    # --- fused experts: two big MXU matmuls over stacked weights ------------
    zb = z.astype(w1c_ref.dtype)                                # bf16 for MXU
    h = jnp.dot(zb, w1c_ref[...], preferred_element_type=jnp.float32)
    h = jnp.maximum(h + b1c_ref[...], 0.0)                      # [tb, E*H], f32
    hs = (h * gw_b).astype(w2c_ref.dtype)                       # per-expert scale
    out = jnp.dot(hs, w2c_ref[...], preferred_element_type=jnp.float32)
    out = out + jnp.dot(gw, b2_ref[...], preferred_element_type=jnp.float32)
    o_ref[...] = out.astype(o_ref.dtype)


def sparse_moe(z, wg, bg, w1, b1, w2, b2, *, k=TOP_K, block_b=512,
               matmul_dtype=jnp.bfloat16):
    B, L = z.shape
    E, _, H = w1.shape
    EH = E * H

    # Stack expert weights so the per-expert loop becomes two big matmuls.
    w1cat = jnp.transpose(w1, (1, 0, 2)).reshape(L, EH).astype(matmul_dtype)
    b1cat = b1.reshape(1, EH).astype(jnp.float32)
    w2cat = w2.reshape(EH, L).astype(matmul_dtype)
    b2f = b2.astype(jnp.float32)
    # Hoisted one-hot selection matrix [E, E*H]: sel[e, e*H:(e+1)*H] = 1.
    sel = (jnp.arange(E, dtype=jnp.int32)[:, None]
           == (jnp.arange(EH, dtype=jnp.int32)[None, :] // H)).astype(matmul_dtype)

    # Batch tiling: overhead-bound regime -> tiles as large as possible while
    # still giving dual-TensorCore parts >=2 grid steps per core for overlap.
    # No padding: Pallas drops OOB writes of a partial last tile.
    if B <= 32:
        tb = B                                        # single tile, full batch
    else:
        tb = min(int(block_b), ((pl.cdiv(B, 4) + 7) // 8) * 8)
        tb = max(8, (tb // 8) * 8)
    grid = (pl.cdiv(B, tb),)

    kernel = functools.partial(sparse_moe_kernel, n_experts=E, k=k)
    out = pl.pallas_call(
        kernel,
        out_shape=jax.ShapeDtypeStruct((B, L), jnp.float32),
        grid_spec=pltpu.PrefetchScalarGridSpec(
            num_scalar_prefetch=0,
            grid=grid,
            in_specs=[
                pl.BlockSpec((tb, L), lambda i: (i, 0)),    # z tile
                pl.BlockSpec((L, E), lambda i: (0, 0)),     # gate weight
                pl.BlockSpec((1, E), lambda i: (0, 0)),     # gate bias
                pl.BlockSpec((L, EH), lambda i: (0, 0)),    # stacked W1
                pl.BlockSpec((1, EH), lambda i: (0, 0)),    # stacked b1
                pl.BlockSpec((EH, L), lambda i: (0, 0)),    # stacked W2
                pl.BlockSpec((E, L), lambda i: (0, 0)),     # stacked b2
                pl.BlockSpec((E, EH), lambda i: (0, 0)),    # one-hot sel
            ],
            out_specs=pl.BlockSpec((tb, L), lambda i: (i, 0)),
        ),
        compiler_params=pltpu.CompilerParams(
            dimension_semantics=("parallel",)),
    )(z, wg, bg, w1cat, b1cat, w2cat, b2f, sel)
    return out


def reference_moe(z, wg, bg, w1, b1, w2, b2, k=TOP_K):
    """Pure-JAX (f32) reference matching the PyTorch forward."""
    logits = z @ wg + bg[0]
    w = jax.nn.softmax(logits, axis=-1)
    topw, idx = jax.lax.top_k(w, k)                              # [B, k]
    h = jnp.maximum(jnp.einsum("bl,elh->beh", z, w1) + b1[None, :, :], 0.0)
    y = jnp.einsum("beh,ehl->bel", h, w2) + b2[None, :, :]       # [B, E, L]
    gathered = jnp.take_along_axis(y, idx[:, :, None], axis=1)   # [B, k, L]
    return jnp.sum(topw[:, :, None] * gathered, axis=1)


if __name__ == "__main__":
    key = jax.random.PRNGKey(0)
    ks = jax.random.split(key, 8)
    B = 256  # -> 4 grid steps of 64 rows (>=2 per TensorCore on dual-core parts)

    def uinit(k_, shape, fan_in):
        bound = 1.0 / jnp.sqrt(fan_in)
        return jax.random.uniform(k_, shape, jnp.float32, -bound, bound)

    z = jax.random.normal(ks[0], (B, LATENT_DIM), jnp.float32)
    wg = uinit(ks[1], (LATENT_DIM, N_EXPERTS), LATENT_DIM)
    bg = uinit(ks[2], (1, N_EXPERTS), LATENT_DIM)
    w1 = uinit(ks[3], (N_EXPERTS, LATENT_DIM, HIDDEN_DIM), LATENT_DIM)
    b1 = uinit(ks[4], (N_EXPERTS, HIDDEN_DIM), LATENT_DIM)
    w2 = uinit(ks[5], (N_EXPERTS, HIDDEN_DIM, LATENT_DIM), HIDDEN_DIM)
    b2 = uinit(ks[6], (N_EXPERTS, LATENT_DIM), HIDDEN_DIM)

    moe = jax.jit(functools.partial(sparse_moe, k=TOP_K))
    out = jax.block_until_ready(moe(z, wg, bg, w1, b1, w2, b2))

    ref = reference_moe(z, wg, bg, w1, b1, w2, b2)
    max_err = jnp.max(jnp.abs(out - ref))
    # bf16 expert-matmul inputs with f32 accumulation -> a few e-3 absolute error.
    assert jnp.allclose(out, ref, atol=3e-2, rtol=3e-2), \
        f"mismatch vs reference (max abs err {max_err})"

    print("KERNEL_OK")
</pallas_src>

<mosaic_0001>
module attributes {stable_mosaic.version = 11 : i64} {
  func.func @sparse_moe_kernel(%arg0: i32, %arg1: memref<64x32xf32, #tpu.memory_space<vmem>>, %arg2: memref<32x4xf32, #tpu.memory_space<vmem>>, %arg3: memref<1x4xf32, #tpu.memory_space<vmem>>, %arg4: memref<32x256xbf16, #tpu.memory_space<vmem>>, %arg5: memref<1x256xf32, #tpu.memory_space<vmem>>, %arg6: memref<256x32xbf16, #tpu.memory_space<vmem>>, %arg7: memref<4x32xf32, #tpu.memory_space<vmem>>, %arg8: memref<4x256xbf16, #tpu.memory_space<vmem>>, %arg9: memref<64x32xf32, #tpu.memory_space<vmem>>) attributes {dimension_semantics = [#tpu.dimension_semantics<parallel>], iteration_bounds = array<i64: 4>, scalar_prefetch = 0 : i64, scratch_operands = 0 : i64, tpu.core_type = #tpu.core_type<tc>, window_params = [{transform_indices = @transform_0, window_bounds = array<i64: 64, 32>}, {pipeline_mode = #tpu.pipeline_mode<synchronous>, transform_indices = @transform_1, window_bounds = array<i64: 32, 4>}, {pipeline_mode = #tpu.pipeline_mode<synchronous>, transform_indices = @transform_2, window_bounds = array<i64: 1, 4>}, {pipeline_mode = #tpu.pipeline_mode<synchronous>, transform_indices = @transform_3, window_bounds = array<i64: 32, 256>}, {pipeline_mode = #tpu.pipeline_mode<synchronous>, transform_indices = @transform_4, window_bounds = array<i64: 1, 256>}, {pipeline_mode = #tpu.pipeline_mode<synchronous>, transform_indices = @transform_5, window_bounds = array<i64: 256, 32>}, {pipeline_mode = #tpu.pipeline_mode<synchronous>, transform_indices = @transform_6, window_bounds = array<i64: 4, 32>}, {pipeline_mode = #tpu.pipeline_mode<synchronous>, transform_indices = @transform_7, window_bounds = array<i64: 4, 256>}, {transform_indices = @transform_8, window_bounds = array<i64: 64, 32>}]} {
    %c0 = arith.constant 0 : index
    %c0_0 = arith.constant 0 : index
    %0 = vector.load %arg1[%c0, %c0_0] : memref<64x32xf32, #tpu.memory_space<vmem>>, vector<64x32xf32>
    %c0_1 = arith.constant 0 : index
    %c0_2 = arith.constant 0 : index
    %1 = vector.load %arg2[%c0_1, %c0_2] : memref<32x4xf32, #tpu.memory_space<vmem>>, vector<32x4xf32>
    %cst = arith.constant dense<0.000000e+00> : vector<64x4xf32>
    %2 = tpu.matmul %0, %1, %cst {dimension_numbers = #tpu.dot_dimension_numbers<[1], [0], [0], [1], [0, 0, 1, 1], [], []>} : vector<64x32xf32>, vector<32x4xf32>, vector<64x4xf32> -> vector<64x4xf32>
    %c0_3 = arith.constant 0 : index
    %c0_4 = arith.constant 0 : index
    %3 = vector.load %arg3[%c0_3, %c0_4] : memref<1x4xf32, #tpu.memory_space<vmem>>, vector<1x4xf32>
    %4 = vector.broadcast %3 : vector<1x4xf32> to vector<64x4xf32>
    %5 = arith.addf %2, %4 : vector<64x4xf32>
    %cst_5 = arith.constant dense<0xFF800000> : vector<64xf32>
    %6 = vector.multi_reduction <maximumf>, %5, %cst_5 [1] : vector<64x4xf32> to vector<64xf32>
    %7 = vector.shape_cast %6 : vector<64xf32> to vector<64x1xf32>
    %8 = vector.broadcast %7 : vector<64x1xf32> to vector<64x4xf32>
    %9 = arith.subf %5, %8 : vector<64x4xf32>
    %10 = math.exp %9 : vector<64x4xf32>
    %11 = tpu.iota {dimensions = array<i32: 1>} : vector<64x4xi32>
    %cst_6 = arith.constant 0.000000e+00 : f32
    %12 = vector.broadcast %cst_6 : f32 to vector<64x4xf32>
    %13 = vector.extract_strided_slice %10 {offsets = [0, 0], sizes = [64, 1], strides = [1, 1]} : vector<64x4xf32> to vector<64x1xf32>
    %14 = vector.broadcast %13 : vector<64x1xf32> to vector<64x4xf32>
    %15 = arith.cmpf ogt, %14, %10 : vector<64x4xf32>
    %16 = arith.extui %15 : vector<64x4xi1> to vector<64x4xi32>
    %17 = arith.sitofp %16 : vector<64x4xi32> to vector<64x4xf32>
    %18 = vector.broadcast %13 : vector<64x1xf32> to vector<64x4xf32>
    %19 = arith.cmpf oge, %18, %10 : vector<64x4xf32>
    %20 = arith.extui %19 : vector<64x4xi1> to vector<64x4xi32>
    %21 = arith.sitofp %20 : vector<64x4xi32> to vector<64x4xf32>
    %c0_i32 = arith.constant 0 : i32
    %22 = vector.broadcast %c0_i32 : i32 to vector<64x4xi32>
    %23 = arith.cmpi sgt, %11, %22 : vector<64x4xi32>
    %c0_i32_7 = arith.constant 0 : i32
    %24 = vector.broadcast %c0_i32_7 : i32 to vector<64x4xi32>
    %25 = arith.cmpi slt, %11, %24 : vector<64x4xi32>
    %cst_8 = arith.constant 0.000000e+00 : f32
    %26 = vector.broadcast %cst_8 : f32 to vector<64x4xf32>
    %27 = arith.select %25, %17, %26 : vector<64x4xi1>, vector<64x4xf32>
    %28 = arith.select %23, %21, %27 : vector<64x4xi1>, vector<64x4xf32>
    %29 = arith.addf %12, %28 : vector<64x4xf32>
    %30 = vector.extract_strided_slice %10 {offsets = [0, 1], sizes = [64, 1], strides = [1, 1]} : vector<64x4xf32> to vector<64x1xf32>
    %31 = vector.broadcast %30 : vector<64x1xf32> to vector<64x4xf32>
    %32 = arith.cmpf ogt, %31, %10 : vector<64x4xf32>
    %33 = arith.extui %32 : vector<64x4xi1> to vector<64x4xi32>
    %34 = arith.sitofp %33 : vector<64x4xi32> to vector<64x4xf32>
    %35 = vector.broadcast %30 : vector<64x1xf32> to vector<64x4xf32>
    %36 = arith.cmpf oge, %35, %10 : vector<64x4xf32>
    %37 = arith.extui %36 : vector<64x4xi1> to vector<64x4xi32>
    %38 = arith.sitofp %37 : vector<64x4xi32> to vector<64x4xf32>
    %c1_i32 = arith.constant 1 : i32
    %39 = vector.broadcast %c1_i32 : i32 to vector<64x4xi32>
    %40 = arith.cmpi sgt, %11, %39 : vector<64x4xi32>
    %c1_i32_9 = arith.constant 1 : i32
    %41 = vector.broadcast %c1_i32_9 : i32 to vector<64x4xi32>
    %42 = arith.cmpi slt, %11, %41 : vector<64x4xi32>
    %cst_10 = arith.constant 0.000000e+00 : f32
    %43 = vector.broadcast %cst_10 : f32 to vector<64x4xf32>
    %44 = arith.select %42, %34, %43 : vector<64x4xi1>, vector<64x4xf32>
    %45 = arith.select %40, %38, %44 : vector<64x4xi1>, vector<64x4xf32>
    %46 = arith.addf %29, %45 : vector<64x4xf32>
    %47 = vector.extract_strided_slice %10 {offsets = [0, 2], sizes = [64, 1], strides = [1, 1]} : vector<64x4xf32> to vector<64x1xf32>
    %48 = vector.broadcast %47 : vector<64x1xf32> to vector<64x4xf32>
    %49 = arith.cmpf ogt, %48, %10 : vector<64x4xf32>
    %50 = arith.extui %49 : vector<64x4xi1> to vector<64x4xi32>
    %51 = arith.sitofp %50 : vector<64x4xi32> to vector<64x4xf32>
    %52 = vector.broadcast %47 : vector<64x1xf32> to vector<64x4xf32>
    %53 = arith.cmpf oge, %52, %10 : vector<64x4xf32>
    %54 = arith.extui %53 : vector<64x4xi1> to vector<64x4xi32>
    %55 = arith.sitofp %54 : vector<64x4xi32> to vector<64x4xf32>
    %c2_i32 = arith.constant 2 : i32
    %56 = vector.broadcast %c2_i32 : i32 to vector<64x4xi32>
    %57 = arith.cmpi sgt, %11, %56 : vector<64x4xi32>
    %c2_i32_11 = arith.constant 2 : i32
    %58 = vector.broadcast %c2_i32_11 : i32 to vector<64x4xi32>
    %59 = arith.cmpi slt, %11, %58 : vector<64x4xi32>
    %cst_12 = arith.constant 0.000000e+00 : f32
    %60 = vector.broadcast %cst_12 : f32 to vector<64x4xf32>
    %61 = arith.select %59, %51, %60 : vector<64x4xi1>, vector<64x4xf32>
    %62 = arith.select %57, %55, %61 : vector<64x4xi1>, vector<64x4xf32>
    %63 = arith.addf %46, %62 : vector<64x4xf32>
    %64 = vector.extract_strided_slice %10 {offsets = [0, 3], sizes = [64, 1], strides = [1, 1]} : vector<64x4xf32> to vector<64x1xf32>
    %65 = vector.broadcast %64 : vector<64x1xf32> to vector<64x4xf32>
    %66 = arith.cmpf ogt, %65, %10 : vector<64x4xf32>
    %67 = arith.extui %66 : vector<64x4xi1> to vector<64x4xi32>
    %68 = arith.sitofp %67 : vector<64x4xi32> to vector<64x4xf32>
    %69 = vector.broadcast %64 : vector<64x1xf32> to vector<64x4xf32>
    %70 = arith.cmpf oge, %69, %10 : vector<64x4xf32>
    %71 = arith.extui %70 : vector<64x4xi1> to vector<64x4xi32>
    %72 = arith.sitofp %71 : vector<64x4xi32> to vector<64x4xf32>
    %c3_i32 = arith.constant 3 : i32
    %73 = vector.broadcast %c3_i32 : i32 to vector<64x4xi32>
    %74 = arith.cmpi sgt, %11, %73 : vector<64x4xi32>
    %c3_i32_13 = arith.constant 3 : i32
    %75 = vector.broadcast %c3_i32_13 : i32 to vector<64x4xi32>
    %76 = arith.cmpi slt, %11, %75 : vector<64x4xi32>
    %cst_14 = arith.constant 0.000000e+00 : f32
    %77 = vector.broadcast %cst_14 : f32 to vector<64x4xf32>
    %78 = arith.select %76, %68, %77 : vector<64x4xi1>, vector<64x4xf32>
    %79 = arith.select %74, %72, %78 : vector<64x4xi1>, vector<64x4xf32>
    %80 = arith.addf %63, %79 : vector<64x4xf32>
    %cst_15 = arith.constant dense<0.000000e+00> : vector<64xf32>
    %81 = vector.multi_reduction <add>, %10, %cst_15 [1] : vector<64x4xf32> to vector<64xf32>
    %82 = vector.shape_cast %81 : vector<64xf32> to vector<64x1xf32>
    %cst_16 = arith.constant 2.000000e+00 : f32
    %83 = vector.broadcast %cst_16 : f32 to vector<64x4xf32>
    %84 = arith.cmpf olt, %80, %83 : vector<64x4xf32>
    %cst_17 = arith.constant 0.000000e+00 : f32
    %85 = vector.broadcast %cst_17 : f32 to vector<64x4xf32>
    %86 = arith.select %84, %10, %85 : vector<64x4xi1>, vector<64x4xf32>
    %87 = vector.broadcast %82 : vector<64x1xf32> to vector<64x4xf32>
    %88 = arith.divf %86, %87 : vector<64x4xf32>
    %89 = arith.truncf %88 : vector<64x4xf32> to vector<64x4xbf16>
    %c0_18 = arith.constant 0 : index
    %c0_19 = arith.constant 0 : index
    %90 = vector.load %arg8[%c0_18, %c0_19] : memref<4x256xbf16, #tpu.memory_space<vmem>>, vector<4x256xbf16>
    %cst_20 = arith.constant dense<0.000000e+00> : vector<64x256xf32>
    %91 = tpu.matmul %89, %90, %cst_20 {dimension_numbers = #tpu.dot_dimension_numbers<[1], [0], [0], [1], [0, 0, 1, 1], [], []>} : vector<64x4xbf16>, vector<4x256xbf16>, vector<64x256xf32> -> vector<64x256xf32>
    %92 = arith.truncf %0 : vector<64x32xf32> to vector<64x32xbf16>
    %c0_21 = arith.constant 0 : index
    %c0_22 = arith.constant 0 : index
    %93 = vector.load %arg4[%c0_21, %c0_22] : memref<32x256xbf16, #tpu.memory_space<vmem>>, vector<32x256xbf16>
    %cst_23 = arith.constant dense<0.000000e+00> : vector<64x256xf32>
    %94 = tpu.matmul %92, %93, %cst_23 {dimension_numbers = #tpu.dot_dimension_numbers<[1], [0], [0], [1], [0, 0, 1, 1], [], []>} : vector<64x32xbf16>, vector<32x256xbf16>, vector<64x256xf32> -> vector<64x256xf32>
    %c0_24 = arith.constant 0 : index
    %c0_25 = arith.constant 0 : index
    %95 = vector.load %arg5[%c0_24, %c0_25] : memref<1x256xf32, #tpu.memory_space<vmem>>, vector<1x256xf32>
    %96 = vector.broadcast %95 : vector<1x256xf32> to vector<64x256xf32>
    %97 = arith.addf %94, %96 : vector<64x256xf32>
    %cst_26 = arith.constant 0.000000e+00 : f32
    %98 = vector.broadcast %cst_26 : f32 to vector<64x256xf32>
    %99 = arith.maximumf %97, %98 : vector<64x256xf32>
    %100 = arith.mulf %99, %91 : vector<64x256xf32>
    %101 = arith.truncf %100 : vector<64x256xf32> to vector<64x256xbf16>
    %c0_27 = arith.constant 0 : index
    %c0_28 = arith.constant 0 : index
    %102 = vector.load %arg6[%c0_27, %c0_28] : memref<256x32xbf16, #tpu.memory_space<vmem>>, vector<256x32xbf16>
    %cst_29 = arith.constant dense<0.000000e+00> : vector<64x32xf32>
    %103 = tpu.matmul %101, %102, %cst_29 {dimension_numbers = #tpu.dot_dimension_numbers<[1], [0], [0], [1], [0, 0, 1, 1], [], []>} : vector<64x256xbf16>, vector<256x32xbf16>, vector<64x32xf32> -> vector<64x32xf32>
    %c0_30 = arith.constant 0 : index
    %c0_31 = arith.constant 0 : index
    %104 = vector.load %arg7[%c0_30, %c0_31] : memref<4x32xf32, #tpu.memory_space<vmem>>, vector<4x32xf32>
    %cst_32 = arith.constant dense<0.000000e+00> : vector<64x32xf32>
    %105 = tpu.matmul %88, %104, %cst_32 {dimension_numbers = #tpu.dot_dimension_numbers<[1], [0], [0], [1], [0, 0, 1, 1], [], []>} : vector<64x4xf32>, vector<4x32xf32>, vector<64x32xf32> -> vector<64x32xf32>
    %106 = arith.addf %103, %105 : vector<64x32xf32>
    %c0_33 = arith.constant 0 : index
    %c0_34 = arith.constant 0 : index
    %107 = vector.load %arg9[%c0_33, %c0_34] : memref<64x32xf32, #tpu.memory_space<vmem>>, vector<64x32xf32>
    tpu.vector_store %arg9[%c0_33, %c0_34], %106 {strides = array<i32>} : memref<64x32xf32, #tpu.memory_space<vmem>>, vector<64x32xf32>,
    return
  }
  func.func @transform_0(%arg0: i32) -> (i32, i32) {
    %c0_i32 = arith.constant 0 : i32
    %c0_i32_0 = arith.constant 0 : i32
    return %arg0, %c0_i32 : i32, i32
  }
  func.func @transform_1(%arg0: i32) -> (i32, i32) {
    %c0_i32 = arith.constant 0 : i32
    %c0_i32_0 = arith.constant 0 : i32
    %c0_i32_1 = arith.constant 0 : i32
    return %c0_i32, %c0_i32_0 : i32, i32
  }
  func.func @transform_2(%arg0: i32) -> (i32, i32) {
    %c0_i32 = arith.constant 0 : i32
    %c0_i32_0 = arith.constant 0 : i32
    %c0_i32_1 = arith.constant 0 : i32
    return %c0_i32, %c0_i32_0 : i32, i32
  }
  func.func @transform_3(%arg0: i32) -> (i32, i32) {
    %c0_i32 = arith.constant 0 : i32
    %c0_i32_0 = arith.constant 0 : i32
    %c0_i32_1 = arith.constant 0 : i32
    return %c0_i32, %c0_i32_0 : i32, i32
  }
  func.func @transform_4(%arg0: i32) -> (i32, i32) {
    %c0_i32 = arith.constant 0 : i32
    %c0_i32_0 = arith.constant 0 : i32
    %c0_i32_1 = arith.constant 0 : i32
    return %c0_i32, %c0_i32_0 : i32, i32
  }
  func.func @transform_5(%arg0: i32) -> (i32, i32) {
    %c0_i32 = arith.constant 0 : i32
    %c0_i32_0 = arith.constant 0 : i32
    %c0_i32_1 = arith.constant 0 : i32
    return %c0_i32, %c0_i32_0 : i32, i32
  }
  func.func @transform_6(%arg0: i32) -> (i32, i32) {
    %c0_i32 = arith.constant 0 : i32
    %c0_i32_0 = arith.constant 0 : i32
    %c0_i32_1 = arith.constant 0 : i32
    return %c0_i32, %c0_i32_0 : i32, i32
  }
  func.func @transform_7(%arg0: i32) -> (i32, i32) {
    %c0_i32 = arith.constant 0 : i32
    %c0_i32_0 = arith.constant 0 : i32
    %c0_i32_1 = arith.constant 0 : i32
    return %c0_i32, %c0_i32_0 : i32, i32
  }
  func.func @transform_8(%arg0: i32) -> (i32, i32) {
    %c0_i32 = arith.constant 0 : i32
    %c0_i32_0 = arith.constant 0 : i32
    return %arg0, %c0_i32 : i32, i32
  }
}

</mosaic_0001>

<llo_original>
// kernel: sparse_moe.1
$region0: #{sparse_moe.1}
  #allocation0 [shape = 'u32[]', space=smem, size = 0x4, offset = 0x4, fixed_abs, tag = 'smem constant byte address 0x4 - core index']
  #allocation1 [shape = 'u32[144,128]{1,0:T(1,128)}', space=vmem, size = 0x12000, scoped, tag = 'internal scratch']
  %s0 = inlined_call_operand.vmem [shape: f32[256,32], index: 0, kind: input, shape index: {}]
  %s1 = inlined_call_operand.vmem [shape: f32[32,4], index: 1, kind: input, shape index: {}]
  %s2 = inlined_call_operand.vmem [shape: f32[1,4], index: 2, kind: input, shape index: {}]
  %s3 = inlined_call_operand.vmem [shape: bf16[32,256], index: 3, kind: input, shape index: {}]
  %s4 = inlined_call_operand.vmem [shape: f32[1,256], index: 4, kind: input, shape index: {}]
  %s5 = inlined_call_operand.vmem [shape: bf16[256,32], index: 5, kind: input, shape index: {}]
  %s6 = inlined_call_operand.vmem [shape: f32[4,32], index: 6, kind: input, shape index: {}]
  %s7 = inlined_call_operand.vmem [shape: bf16[4,256], index: 7, kind: input, shape index: {}]
  %s8 = inlined_call_operand.vmem [shape: f32[256,32], index: 8, kind: output, shape index: {}]
  %s9 = sld [smem:[#allocation0]]
  $region65: #{sparse_moe.1} parent=0
    _
  %s11 = ssub.s32 1, %s9
  %s12 = scalar_select 0, %s11, %s9
  loop: start=0, step=1, limit=6
  $region2: #{sparse_moe.1} parent=0 // loop_pre_header
    _
  $region3: #{sparse_moe.1} parent=0 // loop_header
    %s14 = sphi 0, %s18
    %p15 = scmp.ge.s32.totalorder %s14, 6
    %s24 = sphi 0, %s26
    %s27 = sphi 0, %s24
    %s28 = sphi 0, %s27
    %s44 = sphi 0, %s28
    %s48 = sphi 0, %s48
    %s50 = sphi 0, %s48
    %s51 = sphi 0, %s50
    %s65 = sphi 0, %s51
    %s69 = sphi 0, %s69
    %s71 = sphi 0, %s69
    %s72 = sphi 0, %s71
    %s86 = sphi 0, %s72
    %s90 = sphi 0, %s90
    %s92 = sphi 0, %s90
    %s93 = sphi 0, %s92
    %s107 = sphi 0, %s93
    %s111 = sphi 0, %s111
    %s113 = sphi 0, %s111
    %s114 = sphi 0, %s113
    %s128 = sphi 0, %s114
    %s132 = sphi 0, %s132
    %s134 = sphi 0, %s132
    %s135 = sphi 0, %s134
    %s149 = sphi 0, %s135
    %s153 = sphi 0, %s153
    %s155 = sphi 0, %s153
    %s156 = sphi 0, %s155
    %s170 = sphi 0, %s156
    %s174 = sphi 0, %s174
    %s176 = sphi 0, %s174
    %s177 = sphi 0, %s176
    %s191 = sphi 0, %s177
    %s197 = sphi 0, %s199
    %s200 = sphi 0, %s197
    %s201 = sphi 0, %s200
    %s217 = sphi 0, %s201
  $region4: #{sparse_moe.1} parent=0 // loop_header_branch
    %17 = sbr.rel (%p15) target = $region8
  $region5: #{sparse_moe.1} parent=0 // loop_body
    %s19 = ssub.s32 %s14, 1
    %s20 = ssub.s32 %s14, 2
    %s21 = sadd.s32 %s14, 1
    %s22 = ssub.s32 %s14, %s21
    %p23 = scmp.eq.s32.totalorder %s22, 0
    %s25 = sadd.s32 %s24, 1
    %s26 = scalar_select %p23, %s24, %s25
    %p29 = pneg %p23
    %p30 = scmp.eq.s32.totalorder %s14, 3
    %p31 = por %p29, %p30
    %p32 = scmp.ne.s32.totalorder %s24, %s27
    %p33 = scmp.eq.s32.totalorder %s14, 0
    %p34 = por %p32, %p33
    %p35 = scmp.ne.s32.totalorder %s24, %s27
    %p36 = scmp.eq.s32.totalorder %s19, 3
    %p37 = por %p35, %p36
    %p38 = scmp.ne.s32.totalorder %s27, %s28
    %p39 = scmp.eq.s32.totalorder %s19, 0
    %p40 = por %p38, %p39
    %p41 = scmp.ne.s32.totalorder %s27, %s28
    %p42 = scmp.eq.s32.totalorder %s20, 3
    %p43 = por %p41, %p42
    %p45 = scmp.ne.s32.totalorder %s28, %s44
    %p46 = scmp.eq.s32.totalorder %s20, 0
    %p47 = por %p45, %p46
    %s49 = sadd.s32 %s48, 1
    %p52 = scmp.eq.s32.totalorder %s14, 3
    %p53 = scmp.ne.s32.totalorder %s48, %s50
    %p54 = scmp.eq.s32.totalorder %s14, 0
    %p55 = por %p53, %p54
    %p56 = scmp.ne.s32.totalorder %s48, %s50
    %p57 = scmp.eq.s32.totalorder %s19, 3
    %p58 = por %p56, %p57
    %p59 = scmp.ne.s32.totalorder %s50, %s51
    %p60 = scmp.eq.s32.totalorder %s19, 0
    %p61 = por %p59, %p60
    %p62 = scmp.ne.s32.totalorder %s50, %s51
    %p63 = scmp.eq.s32.totalorder %s20, 3
    %p64 = por %p62, %p63
    %p66 = scmp.ne.s32.totalorder %s51, %s65
    %p67 = scmp.eq.s32.totalorder %s20, 0
    %p68 = por %p66, %p67
    %s70 = sadd.s32 %s69, 1
    %p73 = scmp.eq.s32.totalorder %s14, 3
    %p74 = scmp.ne.s32.totalorder %s69, %s71
    %p75 = scmp.eq.s32.totalorder %s14, 0
    %p76 = por %p74, %p75
    %p77 = scmp.ne.s32.totalorder %s69, %s71
    %p78 = scmp.eq.s32.totalorder %s19, 3
    %p79 = por %p77, %p78
    %p80 = scmp.ne.s32.totalorder %s71, %s72
    %p81 = scmp.eq.s32.totalorder %s19, 0
    %p82 = por %p80, %p81
    %p83 = scmp.ne.s32.totalorder %s71, %s72
    %p84 = scmp.eq.s32.totalorder %s20, 3
    %p85 = por %p83, %p84
    %p87 = scmp.ne.s32.totalorder %s72, %s86
    %p88 = scmp.eq.s32.totalorder %s20, 0
    %p89 = por %p87, %p88
    %s91 = sadd.s32 %s90, 1
    %p94 = scmp.eq.s32.totalorder %s14, 3
    %p95 = scmp.ne.s32.totalorder %s90, %s92
    %p96 = scmp.eq.s32.totalorder %s14, 0
    %p97 = por %p95, %p96
    %p98 = scmp.ne.s32.totalorder %s90, %s92
    %p99 = scmp.eq.s32.totalorder %s19, 3
    %p100 = por %p98, %p99
    %p101 = scmp.ne.s32.totalorder %s92, %s93
    %p102 = scmp.eq.s32.totalorder %s19, 0
    %p103 = por %p101, %p102
    %p104 = scmp.ne.s32.totalorder %s92, %s93
    %p105 = scmp.eq.s32.totalorder %s20, 3
    %p106 = por %p104, %p105
    %p108 = scmp.ne.s32.totalorder %s93, %s107
    %p109 = scmp.eq.s32.totalorder %s20, 0
    %p110 = por %p108, %p109
    %s112 = sadd.s32 %s111, 1
    %p115 = scmp.eq.s32.totalorder %s14, 3
    %p116 = scmp.ne.s32.totalorder %s111, %s113
    %p117 = scmp.eq.s32.totalorder %s14, 0
    %p118 = por %p116, %p117
    %p119 = scmp.ne.s32.totalorder %s111, %s113
    %p120 = scmp.eq.s32.totalorder %s19, 3
    %p121 = por %p119, %p120
    %p122 = scmp.ne.s32.totalorder %s113, %s114
    %p123 = scmp.eq.s32.totalorder %s19, 0
    %p124 = por %p122, %p123
    %p125 = scmp.ne.s32.totalorder %s113, %s114
    %p126 = scmp.eq.s32.totalorder %s20, 3
    %p127 = por %p125, %p126
    %p129 = scmp.ne.s32.totalorder %s114, %s128
    %p130 = scmp.eq.s32.totalorder %s20, 0
    %p131 = por %p129, %p130
    %s133 = sadd.s32 %s132, 1
    %p136 = scmp.eq.s32.totalorder %s14, 3
    %p137 = scmp.ne.s32.totalorder %s132, %s134
    %p138 = scmp.eq.s32.totalorder %s14, 0
    %p139 = por %p137, %p138
    %p140 = scmp.ne.s32.totalorder %s132, %s134
    %p141 = scmp.eq.s32.totalorder %s19, 3
    %p142 = por %p140, %p141
    %p143 = scmp.ne.s32.totalorder %s134, %s135
    %p144 = scmp.eq.s32.totalorder %s19, 0
    %p145 = por %p143, %p144
    %p146 = scmp.ne.s32.totalorder %s134, %s135
    %p147 = scmp.eq.s32.totalorder %s20, 3
    %p148 = por %p146, %p147
    %p150 = scmp.ne.s32.totalorder %s135, %s149
    %p151 = scmp.eq.s32.totalorder %s20, 0
    %p152 = por %p150, %p151
    %s154 = sadd.s32 %s153, 1
    %p157 = scmp.eq.s32.totalorder %s14, 3
    %p158 = scmp.ne.s32.totalorder %s153, %s155
    %p159 = scmp.eq.s32.totalorder %s14, 0
    %p160 = por %p158, %p159
    %p161 = scmp.ne.s32.totalorder %s153, %s155
    %p162 = scmp.eq.s32.totalorder %s19, 3
    %p163 = por %p161, %p162
    %p164 = scmp.ne.s32.totalorder %s155, %s156
    %p165 = scmp.eq.s32.totalorder %s19, 0
    %p166 = por %p164, %p165
    %p167 = scmp.ne.s32.totalorder %s155, %s156
    %p168 = scmp.eq.s32.totalorder %s20, 3
    %p169 = por %p167, %p168
    %p171 = scmp.ne.s32.totalorder %s156, %s170
    %p172 = scmp.eq.s32.totalorder %s20, 0
    %p173 = por %p171, %p172
    %s175 = sadd.s32 %s174, 1
    %p178 = scmp.eq.s32.totalorder %s14, 3
    %p179 = scmp.ne.s32.totalorder %s174, %s176
    %p180 = scmp.eq.s32.totalorder %s14, 0
    %p181 = por %p179, %p180
    %p182 = scmp.ne.s32.totalorder %s174, %s176
    %p183 = scmp.eq.s32.totalorder %s19, 3
    %p184 = por %p182, %p183
    %p185 = scmp.ne.s32.totalorder %s176, %s177
    %p186 = scmp.eq.s32.totalorder %s19, 0
    %p187 = por %p185, %p186
    %p188 = scmp.ne.s32.totalorder %s176, %s177
    %p189 = scmp.eq.s32.totalorder %s20, 3
    %p190 = por %p188, %p189
    %p192 = scmp.ne.s32.totalorder %s177, %s191
    %p193 = scmp.eq.s32.totalorder %s20, 0
    %p194 = por %p192, %p193
    %s195 = ssub.s32 %s14, %s21
    %p196 = scmp.eq.s32.totalorder %s195, 0
    %s198 = sadd.s32 %s197, 1
    %s199 = scalar_select %p196, %s197, %s198
    %p202 = pneg %p196
    %p203 = scmp.eq.s32.totalorder %s14, 3
    %p204 = por %p202, %p203
    %p205 = scmp.ne.s32.totalorder %s197, %s200
    %p206 = scmp.eq.s32.totalorder %s14, 0
    %p207 = por %p205, %p206
    %p208 = scmp.ne.s32.totalorder %s197, %s200
    %p209 = scmp.eq.s32.totalorder %s19, 3
    %p210 = por %p208, %p209
    %p211 = scmp.ne.s32.totalorder %s200, %s201
    %p212 = scmp.eq.s32.totalorder %s19, 0
    %p213 = por %p211, %p212
    %p214 = scmp.ne.s32.totalorder %s200, %s201
    %p215 = scmp.eq.s32.totalorder %s20, 3
    %p216 = por %p214, %p215
    %p218 = scmp.ne.s32.totalorder %s201, %s217
    %p219 = scmp.eq.s32.totalorder %s20, 0
    %p220 = por %p218, %p219
    %p221 = scmp.le.s32.totalorder 1, %s14
    %p222 = scmp.lt.s32.totalorder %s14, 5
    %p223 = pnand %p221, %p222
    %p224 = pneg %p223
    // Predicated region
    $region9: #{sparse_moe.1} parent=5 // pred_check
      _
    $region10: #{sparse_moe.1} parent=5 // pred_check_branch
      %226 = sbr.rel (%p223) target = $region12
    $region11: #{sparse_moe.1} parent=5 // pred_region
      %s227 = ssub.s32 %s14, 1
      // Predicated region
      $region13: #{sparse_moe.1} parent=11 // pred_check
        %p228 = pneg %p61
      $region14: #{sparse_moe.1} parent=11 // pred_check_branch
        %230 = sbr.rel (%p228) target = $region16
      $region15: #{sparse_moe.1} parent=11 // pred_region
        _
      $region16: #{sparse_moe.1} parent=11 // pred_fallthru
        _
      // Predicated region
      $region17: #{sparse_moe.1} parent=11 // pred_check
        %p231 = pneg %p82
      $region18: #{sparse_moe.1} parent=11 // pred_check_branch
        %233 = sbr.rel (%p231) target = $region20
      $region19: #{sparse_moe.1} parent=11 // pred_region
        _
      $region20: #{sparse_moe.1} parent=11 // pred_fallthru
        _
      // Predicated region
      $region21: #{sparse_moe.1} parent=11 // pred_check
        %p234 = pneg %p103
      $region22: #{sparse_moe.1} parent=11 // pred_check_branch
        %236 = sbr.rel (%p234) target = $region24
      $region23: #{sparse_moe.1} parent=11 // pred_region
        _
      $region24: #{sparse_moe.1} parent=11 // pred_fallthru
        _
      // Predicated region
      $region25: #{sparse_moe.1} parent=11 // pred_check
        %p237 = pneg %p124
      $region26: #{sparse_moe.1} parent=11 // pred_check_branch
        %239 = sbr.rel (%p237) target = $region28
      $region27: #{sparse_moe.1} parent=11 // pred_region
        _
      $region28: #{sparse_moe.1} parent=11 // pred_fallthru
        _
      // Predicated region
      $region29: #{sparse_moe.1} parent=11 // pred_check
        %p240 = pneg %p145
      $region30: #{sparse_moe.1} parent=11 // pred_check_branch
        %242 = sbr.rel (%p240) target = $region32
      $region31: #{sparse_moe.1} parent=11 // pred_region
        _
      $region32: #{sparse_moe.1} parent=11 // pred_fallthru
        _
      // Predicated region
      $region33: #{sparse_moe.1} parent=11 // pred_check
        %p243 = pneg %p166
      $region34: #{sparse_moe.1} parent=11 // pred_check_branch
        %245 = sbr.rel (%p243) target = $region36
      $region35: #{sparse_moe.1} parent=11 // pred_region
        _
      $region36: #{sparse_moe.1} parent=11 // pred_fallthru
        _
      // Predicated region
      $region37: #{sparse_moe.1} parent=11 // pred_check
        %p246 = pneg %p187
      $region38: #{sparse_moe.1} parent=11 // pred_check_branch
        %248 = sbr.rel (%p246) target = $region40
      $region39: #{sparse_moe.1} parent=11 // pred_region
        _
      $region40: #{sparse_moe.1} parent=11 // pred_fallthru
        _
    $region12: #{sparse_moe.1} parent=5 // pred_fallthru
      _
    %p249 = scmp.lt.s32.totalorder %s14, 4
    // Predicated region
    $region41: #{sparse_moe.1} parent=5 // pred_check
      %p250 = pneg %p249
    $region42: #{sparse_moe.1} parent=5 // pred_check_branch
      %252 = sbr.rel (%p250) target = $region44
    $region43: #{sparse_moe.1} parent=5 // pred_region
      // Predicated region
      $region45: #{sparse_moe.1} parent=43 // pred_check
        %p253 = pneg %p34
      $region46: #{sparse_moe.1} parent=43 // pred_check_branch
        %255 = sbr.rel (%p253) target = $region48
      $region47: #{sparse_moe.1} parent=43 // pred_region
        %s256 = smul.u32 8, %s14
        %p257 = scmp.lt.s32.totalorder %s256, 31
        %s258 = scalar_select %p257, %s256, 31
        %s259 = smul.addr %s258, 8
        %s260 = scalar_lea.vmem %s0, %s259
        %s261 = smul.u32 8, %s14
      $region48: #{sparse_moe.1} parent=43 // pred_fallthru
        _
    $region44: #{sparse_moe.1} parent=5 // pred_fallthru
      _
    %p262 = scmp.le.s32.totalorder 1, %s14
    %p263 = scmp.lt.s32.totalorder %s14, 5
    %p264 = pnand %p262, %p263
    %p265 = pneg %p264
    // Predicated region
    $region49: #{sparse_moe.1} parent=5 // pred_check
      _
    $region50: #{sparse_moe.1} parent=5 // pred_check_branch
      %267 = sbr.rel (%p264) target = $region52
    $region51: #{sparse_moe.1} parent=5 // pred_region
      %s268 = ssub.s32 %s14, 1
      %s269 = smul.u32 8, %s19
      %p270 = scmp.lt.s32.totalorder %s269, 31
      %s271 = scalar_select %p270, %s269, 31
      %s272 = smul.addr %s271, 8
      %s273 = scalar_lea.vmem %s0, %s272
      %p274 = pneg %p40
      %p275 = pneg %p37
      %p276 = pneg %p61
      %p277 = pneg %p58
      %p278 = pneg %p82
      %p279 = pneg %p79
      %p280 = pneg %p103
      %p281 = pneg %p100
      %p282 = pneg %p124
      %p283 = pneg %p121
      %p284 = pneg %p145
      %p285 = pneg %p142
      %p286 = pneg %p166
      %p287 = pneg %p163
      %p288 = pneg %p187
      %p289 = pneg %p184
      %p290 = pneg %p213
      %p291 = pneg %p210
      %s292 = smul.u32 8, %s19
      %p293 = scmp.lt.s32.totalorder %s292, 31
      %s294 = scalar_select %p293, %s292, 31
      %s295 = smul.addr %s294, 8
      %s296 = scalar_lea.vmem %s8, %s295
      %s297 = smul.u32 8, %s19
      %p298 = scmp.lt.s32.totalorder %s297, 31
      %s299 = scalar_select %p298, %s297, 31
      %s300 = smul.addr %s299, 8
      %s301 = scalar_lea.vmem %s0, %s300
      %s302 = smul.u32 8, %s19
      %s303 = smul.u32 8, %s19
      %p304 = scmp.lt.s32.totalorder %s303, 31
      %s305 = scalar_select %p304, %s303, 31
      %s306 = smul.addr %s305, 8
      %s307 = scalar_lea.vmem %s8, %s306
      %s308 = smul.u32 8, %s19
      %v310 = vld [vmem:[%s301] sm:$0xff]
      %v311 = vld [vmem:[%s301 + $0x8] sm:$0xff]
      %v312 = vld [vmem:[%s301 + $0x10] sm:$0xff]
      %v313 = vld [vmem:[%s301 + $0x18] sm:$0xff]
      %v314 = vld [vmem:[%s301 + $0x20] sm:$0xff]
      %v315 = vld [vmem:[%s301 + $0x28] sm:$0xff]
      %v316 = vld [vmem:[%s301 + $0x30] sm:$0xff]
      %v317 = vld [vmem:[%s301 + $0x38] sm:$0xff]
      %v318 = vld [vmem:[%s1] sm:$0xff]
      %v319 = vld [vmem:[%s1 + $0x8] sm:$0xff]
      %v320 = vld [vmem:[%s1 + $0x10] sm:$0xff]
      %v321 = vld [vmem:[%s1 + $0x18] sm:$0xff]
      %v322 = vld [vmem:[%s2] sm:$0x1]
      %v324 = vlaneseq
      %v325 = vshrl.u32 %v324, 7
      %v326 = vsub.s32 0, %v325
      %v327 = vrot.slane %v322, %v326
      %vm329 = vcmask 261120
      %v331 = vsel %vm329, %v310, 0
      %v334 = vsel %vm329, %v311, 0
      %v337 = vsel %vm329, %v312, 0
      %v340 = vsel %vm329, %v313, 0
      %v343 = vsel %vm329, %v314, 0
      %v346 = vsel %vm329, %v315, 0
      %v349 = vsel %vm329, %v316, 0
      %v352 = vsel %vm329, %v317, 0
      %354 = vmatprep.subr.mxu0 0.0
      %355 = vmatpush1.msra.mxu0 %v318
      %356 = vmatprep.subr.mxu0 0.0
      %357 = vmatpush1.msra.mxu0 %v319
      %358 = vmatprep.subr.mxu0 0.0
      %359 = vmatpush1.msra.mxu0 %v320
      %360 = vmatprep.subr.mxu0 0.0
      %361 = vmatpush1.msra.mxu0 %v321
      %362 = vmatprep.subr.mxu0 0.0
      %363 = vmatpush1.msra.mxu0 0.0
      %364 = vmatprep.subr.mxu0 0.0
      %365 = vmatpush1.msra.mxu0 0.0
      %366 = vmatprep.subr.mxu0 0.0
      %367 = vmatpush1.msra.mxu0 0.0
      %368 = vmatprep.subr.mxu0 0.0
      %369 = vmatpush1.msra.mxu0 0.0
      %370 = vmatprep.subr.mxu0 0.0
      %371 = vmatpush1.msra.mxu0 0.0
      %372 = vmatprep.subr.mxu0 0.0
      %373 = vmatpush1.msra.mxu0 0.0
      %374 = vmatprep.subr.mxu0 0.0
      %375 = vmatpush1.msra.mxu0 0.0
      %376 = vmatprep.subr.mxu0 0.0
      %377 = vmatpush1.msra.mxu0 0.0
      %378 = vmatprep.subr.mxu0 0.0
      %379 = vmatpush1.msra.mxu0 0.0
      %380 = vmatprep.subr.mxu0 0.0
      %381 = vmatpush1.msra.mxu0 0.0
      %382 = vmatprep.subr.mxu0 0.0
      %383 = vmatpush1.msra.mxu0 0.0
      %384 = vmatprep.subr.mxu0 0.0
      %385 = vmatpush1.msra.mxu0 0.0
      %386 = vmatprep.subr.mxu0 0.0
      %387 = vmatpush1.msra.mxu0 0.0
      %388 = vmatprep.subr.mxu0 0.0
      %389 = vmatpush1.msra.mxu0 0.0
      %390 = vmatprep.subr.mxu0 0.0
      %391 = vmatpush1.msra.mxu0 0.0
      %392 = vmatprep.subr.mxu0 0.0
      %393 = vmatpush1.msra.mxu0 0.0
      %394 = vmatprep.subr.mxu0 0.0
      %395 = vmatpush1.msra.mxu0 0.0
      %396 = vmatprep.subr.mxu0 0.0
      %397 = vmatpush1.msra.mxu0 0.0
      %398 = vmatprep.subr.mxu0 0.0
      %399 = vmatpush1.msra.mxu0 0.0
      %400 = vmatprep.subr.mxu0 0.0
      %401 = vmatpush1.msra.mxu0 0.0
      %402 = vmatprep.subr.mxu0 0.0
      %403 = vmatpush1.msra.mxu0 0.0
      %404 = vmatprep.subr.mxu0 0.0
      %405 = vmatpush1.msra.mxu0 0.0
      %406 = vmatprep.subr.mxu0 0.0
      %407 = vmatpush1.msra.mxu0 0.0
      %408 = vmatprep.subr.mxu0 0.0
      %409 = vmatpush1.msra.mxu0 0.0
      %410 = vmatprep.subr.mxu0 0.0
      %411 = vmatpush1.msra.mxu0 0.0
      %412 = vmatprep.subr.mxu0 0.0
      %413 = vmatpush1.msra.mxu0 0.0
      %414 = vmatprep.subr.mxu0 0.0
      %415 = vmatpush1.msra.mxu0 0.0
      %416 = vmatprep.subr.mxu0 0.0
      %417 = vmatpush1.msra.mxu0 0.0
      %418 = vmatprep.mubr.f32.mxu0 0.0
      %419 = vmatmul.mubr.f32.gmra.mrb[0].mxu0 %v331
      %v420 = vpop.f32.mrb[0].mxu0
      %v421 = vadd.f32 %v327, %v420
      %v422 = vpop.f32.mrb[0].mxu0
      %423 = vmatprep.mubr.f32.mxu0 0.0
      %424 = vmatmul.mubr.f32.gmra.mrb[0].mxu0 %v334
      %v425 = vpop.f32.mrb[0].mxu0
      %v426 = vadd.f32 %v327, %v425
      %v427 = vpop.f32.mrb[0].mxu0
      %428 = vmatprep.mubr.f32.mxu0 0.0
      %429 = vmatmul.mubr.f32.gmra.mrb[0].mxu0 %v337
      %v430 = vpop.f32.mrb[0].mxu0
      %v431 = vadd.f32 %v327, %v430
      %v432 = vpop.f32.mrb[0].mxu0
      %433 = vmatprep.mubr.f32.mxu0 0.0
      %434 = vmatmul.mubr.f32.gmra.mrb[0].mxu0 %v340
      %v435 = vpop.f32.mrb[0].mxu0
      %v436 = vadd.f32 %v327, %v435
      %v437 = vpop.f32.mrb[0].mxu0
      %438 = vmatprep.mubr.f32.mxu0 0.0
      %439 = vmatmul.mubr.f32.gmra.mrb[0].mxu0 %v343
      %v440 = vpop.f32.mrb[0].mxu0
      %v441 = vadd.f32 %v327, %v440
      %v442 = vpop.f32.mrb[0].mxu0
      %443 = vmatprep.mubr.f32.mxu0 0.0
      %444 = vmatmul.mubr.f32.gmra.mrb[0].mxu0 %v346
      %v445 = vpop.f32.mrb[0].mxu0
      %v446 = vadd.f32 %v327, %v445
      %v447 = vpop.f32.mrb[0].mxu0
      %448 = vmatprep.mubr.f32.mxu0 0.0
      %449 = vmatmul.mubr.f32.gmra.mrb[0].mxu0 %v349
      %v450 = vpop.f32.mrb[0].mxu0
      %v451 = vadd.f32 %v327, %v450
      %v452 = vpop.f32.mrb[0].mxu0
      %453 = vmatprep.mubr.f32.mxu0 0.0
      %454 = vmatmul.mubr.f32.gmra.mrb[0].mxu0 %v352
      %v455 = vpop.f32.mrb[0].mxu0
      %v456 = vadd.f32 %v327, %v455
      %v457 = vpop.f32.mrb[0].mxu0
      %458 = vdwg.mxu0
      %vm459 = vcmask 31744
      %v460 = vsel %vm459, %v421, -inf
      %461 = vmax.xlane.f32.xlu0 %v460
      %v462 = vpop.xlane.xlu0 %461
      %v463 = vsel %vm459, %v426, -inf
      %464 = vmax.xlane.f32.xlu0 %v463
      %v465 = vpop.xlane.xlu0 %464
      %v466 = vsel %vm459, %v431, -inf
      %467 = vmax.xlane.f32.xlu0 %v466
      %v468 = vpop.xlane.xlu0 %467
      %v469 = vsel %vm459, %v436, -inf
      %470 = vmax.xlane.f32.xlu0 %v469
      %v471 = vpop.xlane.xlu0 %470
      %v472 = vsel %vm459, %v441, -inf
      %473 = vmax.xlane.f32.xlu0 %v472
      %v474 = vpop.xlane.xlu0 %473
      %v475 = vsel %vm459, %v446, -inf
      %476 = vmax.xlane.f32.xlu0 %v475
      %v477 = vpop.xlane.xlu0 %476
      %v478 = vsel %vm459, %v451, -inf
      %479 = vmax.xlane.f32.xlu0 %v478
      %v480 = vpop.xlane.xlu0 %479
      %v481 = vsel %vm459, %v456, -inf
      %482 = vmax.xlane.f32.xlu0 %v481
      %v483 = vpop.xlane.xlu0 %482
      %v484 = vsub.f32 %v421, %v462
      %v485 = vsub.f32 %v426, %v465
      %v486 = vsub.f32 %v431, %v468
      %v487 = vsub.f32 %v436, %v471
      %v488 = vsub.f32 %v441, %v474
      %v489 = vsub.f32 %v446, %v477
      %v490 = vsub.f32 %v451, %v480
      %v491 = vsub.f32 %v456, %v483
      %v492 = vmul.f32 %v484, 1.442695
      %v493 = vpow.pop %v492
      %v494 = vmul.f32 %v485, 1.442695
      %v495 = vpow.pop %v494
      %v496 = vmul.f32 %v486, 1.442695
      %v497 = vpow.pop %v496
      %v498 = vmul.f32 %v487, 1.442695
      %v499 = vpow.pop %v498
      %v500 = vmul.f32 %v488, 1.442695
      %v501 = vpow.pop %v500
      %v502 = vmul.f32 %v489, 1.442695
      %v503 = vpow.pop %v502
      %v504 = vmul.f32 %v490, 1.442695
      %v505 = vpow.pop %v504
      %v506 = vmul.f32 %v491, 1.442695
      %v507 = vpow.pop %v506
      %v508 = vlaneseq
      %v509 = vand.u32 %v508, 127
      %511 = vset.pattern.permute.xlu0 0
      %512 = vperm.xlu0 %511, %v493
      %v513 = vpop.permute.xlu0 %512
      %516 = vset.pattern.permute.xlu0 0
      %517 = vperm.xlu0 %516, %v495
      %v518 = vpop.permute.xlu0 %517
      %521 = vset.pattern.permute.xlu0 0
      %522 = vperm.xlu0 %521, %v497
      %v523 = vpop.permute.xlu0 %522
      %526 = vset.pattern.permute.xlu0 0
      %527 = vperm.xlu0 %526, %v499
      %v528 = vpop.permute.xlu0 %527
      %531 = vset.pattern.permute.xlu0 0
      %532 = vperm.xlu0 %531, %v501
      %v533 = vpop.permute.xlu0 %532
      %536 = vset.pattern.permute.xlu0 0
      %537 = vperm.xlu0 %536, %v503
      %v538 = vpop.permute.xlu0 %537
      %541 = vset.pattern.permute.xlu0 0
      %542 = vperm.xlu0 %541, %v505
      %v543 = vpop.permute.xlu0 %542
      %546 = vset.pattern.permute.xlu0 0
      %547 = vperm.xlu0 %546, %v507
      %v548 = vpop.permute.xlu0 %547
      %vm550 = vcmp.gt.f32.partialorder %v513, %v493
      %vm551 = vcmp.gt.f32.partialorder %v518, %v495
      %vm552 = vcmp.gt.f32.partialorder %v523, %v497
      %vm553 = vcmp.gt.f32.partialorder %v528, %v499
      %vm554 = vcmp.gt.f32.partialorder %v533, %v501
      %vm555 = vcmp.gt.f32.partialorder %v538, %v503
      %vm556 = vcmp.gt.f32.partialorder %v543, %v505
      %vm557 = vcmp.gt.f32.partialorder %v548, %v507
      %v558 = vsel %vm550, 1, 0
      %v559 = vsel %vm551, 1, 0
      %v560 = vsel %vm552, 1, 0
      %v561 = vsel %vm553, 1, 0
      %v562 = vsel %vm554, 1, 0
      %v563 = vsel %vm555, 1, 0
      %v564 = vsel %vm556, 1, 0
      %v565 = vsel %vm557, 1, 0
      %v566 = vcvt.s32.f32 %v558
      %v567 = vcvt.s32.f32 %v559
      %v568 = vcvt.s32.f32 %v560
      %v569 = vcvt.s32.f32 %v561
      %v570 = vcvt.s32.f32 %v562
      %v571 = vcvt.s32.f32 %v563
      %v572 = vcvt.s32.f32 %v564
      %v573 = vcvt.s32.f32 %v565
      %vm574 = vcmp.ge.f32.partialorder %v513, %v493
      %vm575 = vcmp.ge.f32.partialorder %v518, %v495
      %vm576 = vcmp.ge.f32.partialorder %v523, %v497
      %vm577 = vcmp.ge.f32.partialorder %v528, %v499
      %vm578 = vcmp.ge.f32.partialorder %v533, %v501
      %vm579 = vcmp.ge.f32.partialorder %v538, %v503
      %vm580 = vcmp.ge.f32.partialorder %v543, %v505
      %vm581 = vcmp.ge.f32.partialorder %v548, %v507
      %v582 = vsel %vm574, 1, 0
      %v583 = vsel %vm575, 1, 0
      %v584 = vsel %vm576, 1, 0
      %v585 = vsel %vm577, 1, 0
      %v586 = vsel %vm578, 1, 0
      %v587 = vsel %vm579, 1, 0
      %v588 = vsel %vm580, 1, 0
      %v589 = vsel %vm581, 1, 0
      %v590 = vcvt.s32.f32 %v582
      %v591 = vcvt.s32.f32 %v583
      %v592 = vcvt.s32.f32 %v584
      %v593 = vcvt.s32.f32 %v585
      %v594 = vcvt.s32.f32 %v586
      %v595 = vcvt.s32.f32 %v587
      %v596 = vcvt.s32.f32 %v588
      %v597 = vcvt.s32.f32 %v589
      %vm598 = vcmp.gt.s32.totalorder %v509, 0
      %vm599 = vcmp.lt.s32.totalorder %v509, 0
      %v600 = vsel %vm599, %v566, 0.0
      %v601 = vsel %vm599, %v567, 0.0
      %v602 = vsel %vm599, %v568, 0.0
      %v603 = vsel %vm599, %v569, 0.0
      %v604 = vsel %vm599, %v570, 0.0
      %v605 = vsel %vm599, %v571, 0.0
      %v606 = vsel %vm599, %v572, 0.0
      %v607 = vsel %vm599, %v573, 0.0
      %v608 = vsel %vm598, %v590, %v600
      %v609 = vsel %vm598, %v591, %v601
      %v610 = vsel %vm598, %v592, %v602
      %v611 = vsel %vm598, %v593, %v603
      %v612 = vsel %vm598, %v594, %v604
      %v613 = vsel %vm598, %v595, %v605
      %v614 = vsel %vm598, %v596, %v606
      %v615 = vsel %vm598, %v597, %v607
      %v616 = vadd.f32 %v608, 0.0
      %v617 = vadd.f32 %v609, 0.0
      %v618 = vadd.f32 %v610, 0.0
      %v619 = vadd.f32 %v611, 0.0
      %v620 = vadd.f32 %v612, 0.0
      %v621 = vadd.f32 %v613, 0.0
      %v622 = vadd.f32 %v614, 0.0
      %v623 = vadd.f32 %v615, 0.0
      %624 = vset.pattern.permute.xlu0 1
      %625 = vperm.xlu0 %624, %v493
      %v626 = vpop.permute.xlu0 %625
      %628 = vset.pattern.permute.xlu0 1
      %629 = vperm.xlu0 %628, %v495
      %v630 = vpop.permute.xlu0 %629
      %632 = vset.pattern.permute.xlu0 1
      %633 = vperm.xlu0 %632, %v497
      %v634 = vpop.permute.xlu0 %633
      %636 = vset.pattern.permute.xlu0 1
      %637 = vperm.xlu0 %636, %v499
      %v638 = vpop.permute.xlu0 %637
      %640 = vset.pattern.permute.xlu0 1
      %641 = vperm.xlu0 %640, %v501
      %v642 = vpop.permute.xlu0 %641
      %644 = vset.pattern.permute.xlu0 1
      %645 = vperm.xlu0 %644, %v503
      %v646 = vpop.permute.xlu0 %645
      %648 = vset.pattern.permute.xlu0 1
      %649 = vperm.xlu0 %648, %v505
      %v650 = vpop.permute.xlu0 %649
      %652 = vset.pattern.permute.xlu0 1
      %653 = vperm.xlu0 %652, %v507
      %v654 = vpop.permute.xlu0 %653
      %vm656 = vcmp.gt.f32.partialorder %v626, %v493
      %vm657 = vcmp.gt.f32.partialorder %v630, %v495
      %vm658 = vcmp.gt.f32.partialorder %v634, %v497
      %vm659 = vcmp.gt.f32.partialorder %v638, %v499
      %vm660 = vcmp.gt.f32.partialorder %v642, %v501
      %vm661 = vcmp.gt.f32.partialorder %v646, %v503
      %vm662 = vcmp.gt.f32.partialorder %v650, %v505
      %vm663 = vcmp.gt.f32.partialorder %v654, %v507
      %v664 = vsel %vm656, 1, 0
      %v665 = vsel %vm657, 1, 0
      %v666 = vsel %vm658, 1, 0
      %v667 = vsel %vm659, 1, 0
      %v668 = vsel %vm660, 1, 0
      %v669 = vsel %vm661, 1, 0
      %v670 = vsel %vm662, 1, 0
      %v671 = vsel %vm663, 1, 0
      %v672 = vcvt.s32.f32 %v664
      %v673 = vcvt.s32.f32 %v665
      %v674 = vcvt.s32.f32 %v666
      %v675 = vcvt.s32.f32 %v667
      %v676 = vcvt.s32.f32 %v668
      %v677 = vcvt.s32.f32 %v669
      %v678 = vcvt.s32.f32 %v670
      %v679 = vcvt.s32.f32 %v671
      %vm680 = vcmp.ge.f32.partialorder %v626, %v493
      %vm681 = vcmp.ge.f32.partialorder %v630, %v495
      %vm682 = vcmp.ge.f32.partialorder %v634, %v497
      %vm683 = vcmp.ge.f32.partialorder %v638, %v499
      %vm684 = vcmp.ge.f32.partialorder %v642, %v501
      %vm685 = vcmp.ge.f32.partialorder %v646, %v503
      %vm686 = vcmp.ge.f32.partialorder %v650, %v505
      %vm687 = vcmp.ge.f32.partialorder %v654, %v507
      %v688 = vsel %vm680, 1, 0
      %v689 = vsel %vm681, 1, 0
      %v690 = vsel %vm682, 1, 0
      %v691 = vsel %vm683, 1, 0
      %v692 = vsel %vm684, 1, 0
      %v693 = vsel %vm685, 1, 0
      %v694 = vsel %vm686, 1, 0
      %v695 = vsel %vm687, 1, 0
      %v696 = vcvt.s32.f32 %v688
      %v697 = vcvt.s32.f32 %v689
      %v698 = vcvt.s32.f32 %v690
      %v699 = vcvt.s32.f32 %v691
      %v700 = vcvt.s32.f32 %v692
      %v701 = vcvt.s32.f32 %v693
      %v702 = vcvt.s32.f32 %v694
      %v703 = vcvt.s32.f32 %v695
      %vm704 = vcmp.gt.s32.totalorder %v509, 1
      %vm705 = vcmp.lt.s32.totalorder %v509, 1
      %v706 = vsel %vm705, %v672, 0.0
      %v707 = vsel %vm705, %v673, 0.0
      %v708 = vsel %vm705, %v674, 0.0
      %v709 = vsel %vm705, %v675, 0.0
      %v710 = vsel %vm705, %v676, 0.0
      %v711 = vsel %vm705, %v677, 0.0
      %v712 = vsel %vm705, %v678, 0.0
      %v713 = vsel %vm705, %v679, 0.0
      %v714 = vsel %vm704, %v696, %v706
      %v715 = vsel %vm704, %v697, %v707
      %v716 = vsel %vm704, %v698, %v708
      %v717 = vsel %vm704, %v699, %v709
      %v718 = vsel %vm704, %v700, %v710
      %v719 = vsel %vm704, %v701, %v711
      %v720 = vsel %vm704, %v702, %v712
      %v721 = vsel %vm704, %v703, %v713
      %v722 = vadd.f32 %v616, %v714
      %v723 = vadd.f32 %v617, %v715
      %v724 = vadd.f32 %v618, %v716
      %v725 = vadd.f32 %v619, %v717
      %v726 = vadd.f32 %v620, %v718
      %v727 = vadd.f32 %v621, %v719
      %v728 = vadd.f32 %v622, %v720
      %v729 = vadd.f32 %v623, %v721
      %730 = vset.pattern.permute.xlu0 2
      %731 = vperm.xlu0 %730, %v493
      %v732 = vpop.permute.xlu0 %731
      %734 = vset.pattern.permute.xlu0 2
      %735 = vperm.xlu0 %734, %v495
      %v736 = vpop.permute.xlu0 %735
      %738 = vset.pattern.permute.xlu0 2
      %739 = vperm.xlu0 %738, %v497
      %v740 = vpop.permute.xlu0 %739
      %742 = vset.pattern.permute.xlu0 2
      %743 = vperm.xlu0 %742, %v499
      %v744 = vpop.permute.xlu0 %743
      %746 = vset.pattern.permute.xlu0 2
      %747 = vperm.xlu0 %746, %v501
      %v748 = vpop.permute.xlu0 %747
      %750 = vset.pattern.permute.xlu0 2
      %751 = vperm.xlu0 %750, %v503
      %v752 = vpop.permute.xlu0 %751
      %754 = vset.pattern.permute.xlu0 2
      %755 = vperm.xlu0 %754, %v505
      %v756 = vpop.permute.xlu0 %755
      %758 = vset.pattern.permute.xlu0 2
      %759 = vperm.xlu0 %758, %v507
      %v760 = vpop.permute.xlu0 %759
      %vm762 = vcmp.gt.f32.partialorder %v732, %v493
      %vm763 = vcmp.gt.f32.partialorder %v736, %v495
      %vm764 = vcmp.gt.f32.partialorder %v740, %v497
      %vm765 = vcmp.gt.f32.partialorder %v744, %v499
      %vm766 = vcmp.gt.f32.partialorder %v748, %v501
      %vm767 = vcmp.gt.f32.partialorder %v752, %v503
      %vm768 = vcmp.gt.f32.partialorder %v756, %v505
      %vm769 = vcmp.gt.f32.partialorder %v760, %v507
      %v770 = vsel %vm762, 1, 0
      %v771 = vsel %vm763, 1, 0
      %v772 = vsel %vm764, 1, 0
      %v773 = vsel %vm765, 1, 0
      %v774 = vsel %vm766, 1, 0
      %v775 = vsel %vm767, 1, 0
      %v776 = vsel %vm768, 1, 0
      %v777 = vsel %vm769, 1, 0
      %v778 = vcvt.s32.f32 %v770
      %v779 = vcvt.s32.f32 %v771
      %v780 = vcvt.s32.f32 %v772
      %v781 = vcvt.s32.f32 %v773
      %v782 = vcvt.s32.f32 %v774
      %v783 = vcvt.s32.f32 %v775
      %v784 = vcvt.s32.f32 %v776
      %v785 = vcvt.s32.f32 %v777
      %vm786 = vcmp.ge.f32.partialorder %v732, %v493
      %vm787 = vcmp.ge.f32.partialorder %v736, %v495
      %vm788 = vcmp.ge.f32.partialorder %v740, %v497
      %vm789 = vcmp.ge.f32.partialorder %v744, %v499
      %vm790 = vcmp.ge.f32.partialorder %v748, %v501
      %vm791 = vcmp.ge.f32.partialorder %v752, %v503
      %vm792 = vcmp.ge.f32.partialorder %v756, %v505
      %vm793 = vcmp.ge.f32.partialorder %v760, %v507
      %v794 = vsel %vm786, 1, 0
      %v795 = vsel %vm787, 1, 0
      %v796 = vsel %vm788, 1, 0
      %v797 = vsel %vm789, 1, 0
      %v798 = vsel %vm790, 1, 0
      %v799 = vsel %vm791, 1, 0
      %v800 = vsel %vm792, 1, 0
      %v801 = vsel %vm793, 1, 0
      %v802 = vcvt.s32.f32 %v794
      %v803 = vcvt.s32.f32 %v795
      %v804 = vcvt.s32.f32 %v796
      %v805 = vcvt.s32.f32 %v797
      %v806 = vcvt.s32.f32 %v798
      %v807 = vcvt.s32.f32 %v799
      %v808 = vcvt.s32.f32 %v800
      %v809 = vcvt.s32.f32 %v801
      %vm810 = vcmp.gt.s32.totalorder %v509, 2
      %vm811 = vcmp.lt.s32.totalorder %v509, 2
      %v812 = vsel %vm811, %v778, 0.0
      %v813 = vsel %vm811, %v779, 0.0
      %v814 = vsel %vm811, %v780, 0.0
      %v815 = vsel %vm811, %v781, 0.0
      %v816 = vsel %vm811, %v782, 0.0
      %v817 = vsel %vm811, %v783, 0.0
      %v818 = vsel %vm811, %v784, 0.0
      %v819 = vsel %vm811, %v785, 0.0
      %v820 = vsel %vm810, %v802, %v812
      %v821 = vsel %vm810, %v803, %v813
      %v822 = vsel %vm810, %v804, %v814
      %v823 = vsel %vm810, %v805, %v815
      %v824 = vsel %vm810, %v806, %v816
      %v825 = vsel %vm810, %v807, %v817
      %v826 = vsel %vm810, %v808, %v818
      %v827 = vsel %vm810, %v809, %v819
      %v828 = vadd.f32 %v722, %v820
      %v829 = vadd.f32 %v723, %v821
      %v830 = vadd.f32 %v724, %v822
      %v831 = vadd.f32 %v725, %v823
      %v832 = vadd.f32 %v726, %v824
      %v833 = vadd.f32 %v727, %v825
      %v834 = vadd.f32 %v728, %v826
      %v835 = vadd.f32 %v729, %v827
      %836 = vset.pattern.permute.xlu0 3
      %837 = vperm.xlu0 %836, %v493
      %v838 = vpop.permute.xlu0 %837
      %840 = vset.pattern.permute.xlu0 3
      %841 = vperm.xlu0 %840, %v495
      %v842 = vpop.permute.xlu0 %841
      %844 = vset.pattern.permute.xlu0 3
      %845 = vperm.xlu0 %844, %v497
      %v846 = vpop.permute.xlu0 %845
      %848 = vset.pattern.permute.xlu0 3
      %849 = vperm.xlu0 %848, %v499
      %v850 = vpop.permute.xlu0 %849
      %852 = vset.pattern.permute.xlu0 3
      %853 = vperm.xlu0 %852, %v501
      %v854 = vpop.permute.xlu0 %853
      %856 = vset.pattern.permute.xlu0 3
      %857 = vperm.xlu0 %856, %v503
      %v858 = vpop.permute.xlu0 %857
      %860 = vset.pattern.permute.xlu0 3
      %861 = vperm.xlu0 %860, %v505
      %v862 = vpop.permute.xlu0 %861
      %864 = vset.pattern.permute.xlu0 3
      %865 = vperm.xlu0 %864, %v507
      %v866 = vpop.permute.xlu0 %865
      %vm868 = vcmp.gt.f32.partialorder %v838, %v493
      %vm869 = vcmp.gt.f32.partialorder %v842, %v495
      %vm870 = vcmp.gt.f32.partialorder %v846, %v497
      %vm871 = vcmp.gt.f32.partialorder %v850, %v499
      %vm872 = vcmp.gt.f32.partialorder %v854, %v501
      %vm873 = vcmp.gt.f32.partialorder %v858, %v503
      %vm874 = vcmp.gt.f32.partialorder %v862, %v505
      %vm875 = vcmp.gt.f32.partialorder %v866, %v507
      %v876 = vsel %vm868, 1, 0
      %v877 = vsel %vm869, 1, 0
      %v878 = vsel %vm870, 1, 0
      %v879 = vsel %vm871, 1, 0
      %v880 = vsel %vm872, 1, 0
      %v881 = vsel %vm873, 1, 0
      %v882 = vsel %vm874, 1, 0
      %v883 = vsel %vm875, 1, 0
      %v884 = vcvt.s32.f32 %v876
      %v885 = vcvt.s32.f32 %v877
      %v886 = vcvt.s32.f32 %v878
      %v887 = vcvt.s32.f32 %v879
      %v888 = vcvt.s32.f32 %v880
      %v889 = vcvt.s32.f32 %v881
      %v890 = vcvt.s32.f32 %v882
      %v891 = vcvt.s32.f32 %v883
      %vm892 = vcmp.ge.f32.partialorder %v838, %v493
      %vm893 = vcmp.ge.f32.partialorder %v842, %v495
      %vm894 = vcmp.ge.f32.partialorder %v846, %v497
      %vm895 = vcmp.ge.f32.partialorder %v850, %v499
      %vm896 = vcmp.ge.f32.partialorder %v854, %v501
      %vm897 = vcmp.ge.f32.partialorder %v858, %v503
      %vm898 = vcmp.ge.f32.partialorder %v862, %v505
      %vm899 = vcmp.ge.f32.partialorder %v866, %v507
      %v900 = vsel %vm892, 1, 0
      %v901 = vsel %vm893, 1, 0
      %v902 = vsel %vm894, 1, 0
      %v903 = vsel %vm895, 1, 0
      %v904 = vsel %vm896, 1, 0
      %v905 = vsel %vm897, 1, 0
      %v906 = vsel %vm898, 1, 0
      %v907 = vsel %vm899, 1, 0
      %v908 = vcvt.s32.f32 %v900
      %v909 = vcvt.s32.f32 %v901
      %v910 = vcvt.s32.f32 %v902
      %v911 = vcvt.s32.f32 %v903
      %v912 = vcvt.s32.f32 %v904
      %v913 = vcvt.s32.f32 %v905
      %v914 = vcvt.s32.f32 %v906
      %v915 = vcvt.s32.f32 %v907
      %vm916 = vcmp.gt.s32.totalorder %v509, 3
      %vm917 = vcmp.lt.s32.totalorder %v509, 3
      %v918 = vsel %vm917, %v884, 0.0
      %v919 = vsel %vm917, %v885, 0.0
      %v920 = vsel %vm917, %v886, 0.0
      %v921 = vsel %vm917, %v887, 0.0
      %v922 = vsel %vm917, %v888, 0.0
      %v923 = vsel %vm917, %v889, 0.0
      %v924 = vsel %vm917, %v890, 0.0
      %v925 = vsel %vm917, %v891, 0.0
      %v926 = vsel %vm916, %v908, %v918
      %v927 = vsel %vm916, %v909, %v919
      %v928 = vsel %vm916, %v910, %v920
      %v929 = vsel %vm916, %v911, %v921
      %v930 = vsel %vm916, %v912, %v922
      %v931 = vsel %vm916, %v913, %v923
      %v932 = vsel %vm916, %v914, %v924
      %v933 = vsel %vm916, %v915, %v925
      %v934 = vadd.f32 %v828, %v926
      %v935 = vadd.f32 %v829, %v927
      %v936 = vadd.f32 %v830, %v928
      %v937 = vadd.f32 %v831, %v929
      %v938 = vadd.f32 %v832, %v930
      %v939 = vadd.f32 %v833, %v931
      %v940 = vadd.f32 %v834, %v932
      %v941 = vadd.f32 %v835, %v933
      %v942 = vsel %vm459, %v493, 0.0
      %943 = vadd.xlane.f32.xlu0 %v942
      %v944 = vpop.xlane.xlu0 %943
      %v945 = vsel %vm459, %v495, 0.0
      %946 = vadd.xlane.f32.xlu0 %v945
      %v947 = vpop.xlane.xlu0 %946
      %v948 = vsel %vm459, %v497, 0.0
      %949 = vadd.xlane.f32.xlu0 %v948
      %v950 = vpop.xlane.xlu0 %949
      %v951 = vsel %vm459, %v499, 0.0
      %952 = vadd.xlane.f32.xlu0 %v951
      %v953 = vpop.xlane.xlu0 %952
      %v954 = vsel %vm459, %v501, 0.0
      %955 = vadd.xlane.f32.xlu0 %v954
      %v956 = vpop.xlane.xlu0 %955
      %v957 = vsel %vm459, %v503, 0.0
      %958 = vadd.xlane.f32.xlu0 %v957
      %v959 = vpop.xlane.xlu0 %958
      %v960 = vsel %vm459, %v505, 0.0
      %961 = vadd.xlane.f32.xlu0 %v960
      %v962 = vpop.xlane.xlu0 %961
      %v963 = vsel %vm459, %v507, 0.0
      %964 = vadd.xlane.f32.xlu0 %v963
      %v965 = vpop.xlane.xlu0 %964
      %vm966 = vcmp.lt.f32.partialorder %v934, 2.0
      %vm967 = vcmp.lt.f32.partialorder %v935, 2.0
      %vm968 = vcmp.lt.f32.partialorder %v936, 2.0
      %vm969 = vcmp.lt.f32.partialorder %v937, 2.0
      %vm970 = vcmp.lt.f32.partialorder %v938, 2.0
      %vm971 = vcmp.lt.f32.partialorder %v939, 2.0
      %vm972 = vcmp.lt.f32.partialorder %v940, 2.0
      %vm973 = vcmp.lt.f32.partialorder %v941, 2.0
      %v974 = vsel %vm966, %v493, 0.0
      %v975 = vsel %vm967, %v495, 0.0
      %v976 = vsel %vm968, %v497, 0.0
      %v977 = vsel %vm969, %v499, 0.0
      %v978 = vsel %vm970, %v501, 0.0
      %v979 = vsel %vm971, %v503, 0.0
      %v980 = vsel %vm972, %v505, 0.0
      %v981 = vsel %vm973, %v507, 0.0
      %v982 = vrcp.pop %v944
      %v983 = vmul.f32 %v974, %v982
      %v984 = vrcp.pop %v947
      %v985 = vmul.f32 %v975, %v984
      %v986 = vrcp.pop %v950
      %v987 = vmul.f32 %v976, %v986
      %v988 = vrcp.pop %v953
      %v989 = vmul.f32 %v977, %v988
      %v990 = vrcp.pop %v956
      %v991 = vmul.f32 %v978, %v990
      %v992 = vrcp.pop %v959
      %v993 = vmul.f32 %v979, %v992
      %v994 = vrcp.pop %v962
      %v995 = vmul.f32 %v980, %v994
      %v996 = vrcp.pop %v965
      %v997 = vmul.f32 %v981, %v996
      %v998 = vpack.c.bf16 %v985, %v983
      %v999 = vpack.c.bf16 %v989, %v987
      %v1000 = vpack.c.bf16 %v993, %v991
      %v1001 = vpack.c.bf16 %v997, %v995
      %v1002 = vld [vmem:[%s7] sm:$0xf]
      %v1005 = vunpack.c.l.s4 1983009808
      %v1006 = vunpack.c.0.s8 %v1005
      %v1007 = vlaneseq
      %v1008 = vshrl.u32 %v1007, 7
      %v1009 = vsub.s32 %v1006, %v1008
      %v1010 = vrot.slane %v1002, %v1009
      %v1011 = vcombine.high %v1010, %v1010
      %v1013 = vsel %vm459, %v998, 0
      %v1016 = vsel %vm459, %v999, 0
      %v1019 = vsel %vm459, %v1000, 0
      %v1022 = vsel %vm459, %v1001, 0
      %vm1024 = vcmask 1041408
      %v1026 = vsel %vm1024, %v1010, 0
      %v1029 = vsel %vm1024, %v1011, 0
      %1031 = vmatprep.subr.bf16.mxu0 %v1029
      %1032 = vmatpush1.bf16.msra.mxu0 %v1026
      %1033 = vmatprep.subr.bf16.mxu0 0
      %1034 = vmatpush1.bf16.msra.mxu0 0
      %1035 = vmatprep.subr.bf16.mxu0 0
      %1036 = vmatpush1.bf16.msra.mxu0 0
      %1037 = vmatprep.subr.bf16.mxu0 0
      %1038 = vmatpush1.bf16.msra.mxu0 0
      %1039 = vmatprep.subr.bf16.mxu0 0
      %1040 = vmatpush1.bf16.msra.mxu0 0
      %1041 = vmatprep.subr.bf16.mxu0 0
      %1042 = vmatpush1.bf16.msra.mxu0 0
      %1043 = vmatprep.subr.bf16.mxu0 0
      %1044 = vmatpush1.bf16.msra.mxu0 0
      %1045 = vmatprep.subr.bf16.mxu0 0
      %1046 = vmatpush1.bf16.msra.mxu0 0
      %1047 = vmatprep.subr.bf16.mxu0 0
      %1048 = vmatpush1.bf16.msra.mxu0 0
      %1049 = vmatprep.subr.bf16.mxu0 0
      %1050 = vmatpush1.bf16.msra.mxu0 0
      %1051 = vmatprep.subr.bf16.mxu0 0
      %1052 = vmatpush1.bf16.msra.mxu0 0
      %1053 = vmatprep.subr.bf16.mxu0 0
      %1054 = vmatpush1.bf16.msra.mxu0 0
      %1055 = vmatprep.subr.bf16.mxu0 0
      %1056 = vmatpush1.bf16.msra.mxu0 0
      %1057 = vmatprep.subr.bf16.mxu0 0
      %1058 = vmatpush1.bf16.msra.mxu0 0
      %1059 = vmatprep.subr.bf16.mxu0 0
      %1060 = vmatpush1.bf16.msra.mxu0 0
      %1061 = vmatprep.subr.bf16.mxu0 0
      %1062 = vmatpush1.bf16.msra.mxu0 0
      %1063 = vmatprep.mubr.bf16.mxu0 0
      %1064 = vmatmul.mubr.bf16.gmra.mrb[0].mxu0 %v1013
      %v1065 = vpop.f32.mrb[0].mxu0
      %v1066 = vadd.f32 0.0, %v1065
      %v1067 = vpop.f32.mrb[0].mxu0
      %v1068 = vadd.f32 0.0, %v1067
      %v1069 = vpop.f32.mrb[0].mxu0
      %v1070 = vadd.f32 0.0, %v1069
      %v1071 = vpop.f32.mrb[0].mxu0
      %v1072 = vadd.f32 0.0, %v1071
      %1073 = vmatprep.mubr.bf16.mxu0 0
      %1074 = vmatmul.mubr.bf16.gmra.mrb[0].mxu0 %v1016
      %v1075 = vpop.f32.mrb[0].mxu0
      %v1076 = vadd.f32 0.0, %v1075
      %v1077 = vpop.f32.mrb[0].mxu0
      %v1078 = vadd.f32 0.0, %v1077
      %v1079 = vpop.f32.mrb[0].mxu0
      %v1080 = vadd.f32 0.0, %v1079
      %v1081 = vpop.f32.mrb[0].mxu0
      %v1082 = vadd.f32 0.0, %v1081
      %1083 = vmatprep.mubr.bf16.mxu0 0
      %1084 = vmatmul.mubr.bf16.gmra.mrb[0].mxu0 %v1019
      %v1085 = vpop.f32.mrb[0].mxu0
      %v1086 = vadd.f32 0.0, %v1085
      %v1087 = vpop.f32.mrb[0].mxu0
      %v1088 = vadd.f32 0.0, %v1087
      %v1089 = vpop.f32.mrb[0].mxu0
      %v1090 = vadd.f32 0.0, %v1089
      %v1091 = vpop.f32.mrb[0].mxu0
      %v1092 = vadd.f32 0.0, %v1091
      %1093 = vmatprep.mubr.bf16.mxu0 0
      %1094 = vmatmul.mubr.bf16.gmra.mrb[0].mxu0 %v1022
      %v1095 = vpop.f32.mrb[0].mxu0
      %v1096 = vadd.f32 0.0, %v1095
      %v1097 = vpop.f32.mrb[0].mxu0
      %v1098 = vadd.f32 0.0, %v1097
      %v1099 = vpop.f32.mrb[0].mxu0
      %v1100 = vadd.f32 0.0, %v1099
      %v1101 = vpop.f32.mrb[0].mxu0
      %v1102 = vadd.f32 0.0, %v1101
      %1103 = vdwg.mxu0
      %v1104 = vpack.c.bf16 %v311, %v310
      %v1105 = vpack.c.bf16 %v313, %v312
      %v1106 = vpack.c.bf16 %v315, %v314
      %v1107 = vpack.c.bf16 %v317, %v316
      %v1108 = vld [vmem:[%s3] sm:$0xff]
      %v1109 = vld [vmem:[%s3 + $0x8] sm:$0xff]
      %v1110 = vld [vmem:[%s3 + $0x10] sm:$0xff]
      %v1111 = vld [vmem:[%s3 + $0x18] sm:$0xff]
      %v1112 = vld [vmem:[%s4] sm:$0x3]
      %v1114 = vlaneseq
      %v1115 = vshrl.u32 %v1114, 7
      %v1116 = vsub.s32 0, %v1115
      %v1117 = vrot.slane %v1112, %v1116
      %v1118 = vlaneseq
      %v1119 = vshrl.u32 %v1118, 7
      %v1120 = vsub.s32 1, %v1119
      %v1121 = vrot.slane %v1112, %v1120
      %v1128 = vunpack.c.l.b16 %v1108
      %v1129 = vunpack.c.h.b16 %v1108
      %v1130 = vunpack.c.l.b16 %v1109
      %v1131 = vunpack.c.h.b16 %v1109
      %v1132 = vunpack.c.l.b16 %v1110
      %v1133 = vunpack.c.h.b16 %v1110
      %v1134 = vunpack.c.l.b16 %v1111
      %v1135 = vunpack.c.h.b16 %v1111
      %v1136 = vpack.c.b16 %v1130, %v1128
      %v1137 = vpack.c.b16 %v1131, %v1129
      %v1138 = vpack.c.b16 %v1134, %v1132
      %v1139 = vpack.c.b16 %v1135, %v1133
      %v1145 = vsel %vm329, %v1104, 0
      %v1148 = vsel %vm329, %v1105, 0
      %v1151 = vsel %vm329, %v1106, 0
      %v1154 = vsel %vm329, %v1107, 0
      %1156 = vmatprep.subr.bf16.mxu0 %v1137
      %1157 = vmatpush1.bf16.msra.mxu0 %v1136
      %1158 = vmatprep.subr.bf16.mxu0 %v1139
      %1159 = vmatpush1.bf16.msra.mxu0 %v1138
      %1160 = vmatprep.subr.bf16.mxu0 0
      %1161 = vmatpush1.bf16.msra.mxu0 0
      %1162 = vmatprep.subr.bf16.mxu0 0
      %1163 = vmatpush1.bf16.msra.mxu0 0
      %1164 = vmatprep.subr.bf16.mxu0 0
      %1165 = vmatpush1.bf16.msra.mxu0 0
      %1166 = vmatprep.subr.bf16.mxu0 0
      %1167 = vmatpush1.bf16.msra.mxu0 0
      %1168 = vmatprep.subr.bf16.mxu0 0
      %1169 = vmatpush1.bf16.msra.mxu0 0
      %1170 = vmatprep.subr.bf16.mxu0 0
      %1171 = vmatpush1.bf16.msra.mxu0 0
      %1172 = vmatprep.subr.bf16.mxu0 0
      %1173 = vmatpush1.bf16.msra.mxu0 0
      %1174 = vmatprep.subr.bf16.mxu0 0
      %1175 = vmatpush1.bf16.msra.mxu0 0
      %1176 = vmatprep.subr.bf16.mxu0 0
      %1177 = vmatpush1.bf16.msra.mxu0 0
      %1178 = vmatprep.subr.bf16.mxu0 0
      %1179 = vmatpush1.bf16.msra.mxu0 0
      %1180 = vmatprep.subr.bf16.mxu0 0
      %1181 = vmatpush1.bf16.msra.mxu0 0
      %1182 = vmatprep.subr.bf16.mxu0 0
      %1183 = vmatpush1.bf16.msra.mxu0 0
      %1184 = vmatprep.subr.bf16.mxu0 0
      %1185 = vmatpush1.bf16.msra.mxu0 0
      %1186 = vmatprep.subr.bf16.mxu0 0
      %1187 = vmatpush1.bf16.msra.mxu0 0
      %1188 = vmatprep.mubr.bf16.mxu0 0
      %1189 = vmatmul.mubr.bf16.gmra.mrb[0].mxu0 %v1145
      %v1190 = vpop.f32.mrb[0].mxu0
      %v1191 = vadd.f32 %v1117, %v1190
      %v1192 = vpop.f32.mrb[0].mxu0
      %v1193 = vadd.f32 %v1121, %v1192
      %v1194 = vpop.f32.mrb[0].mxu0
      %v1195 = vadd.f32 %v1117, %v1194
      %v1196 = vpop.f32.mrb[0].mxu0
      %v1197 = vadd.f32 %v1121, %v1196
      %1198 = vmatprep.mubr.bf16.mxu0 0
      %1199 = vmatmul.mubr.bf16.gmra.mrb[0].mxu0 %v1148
      %v1200 = vpop.f32.mrb[0].mxu0
      %v1201 = vadd.f32 %v1117, %v1200
      %v1202 = vpop.f32.mrb[0].mxu0
      %v1203 = vadd.f32 %v1121, %v1202
      %v1204 = vpop.f32.mrb[0].mxu0
      %v1205 = vadd.f32 %v1117, %v1204
      %v1206 = vpop.f32.mrb[0].mxu0
      %v1207 = vadd.f32 %v1121, %v1206
      %1208 = vmatprep.mubr.bf16.mxu0 0
      %1209 = vmatmul.mubr.bf16.gmra.mrb[0].mxu0 %v1151
      %v1210 = vpop.f32.mrb[0].mxu0
      %v1211 = vadd.f32 %v1117, %v1210
      %v1212 = vpop.f32.mrb[0].mxu0
      %v1213 = vadd.f32 %v1121, %v1212
      %v1214 = vpop.f32.mrb[0].mxu0
      %v1215 = vadd.f32 %v1117, %v1214
      %v1216 = vpop.f32.mrb[0].mxu0
      %v1217 = vadd.f32 %v1121, %v1216
      %1218 = vmatprep.mubr.bf16.mxu0 0
      %1219 = vmatmul.mubr.bf16.gmra.mrb[0].mxu0 %v1154
      %v1220 = vpop.f32.mrb[0].mxu0
      %v1221 = vadd.f32 %v1117, %v1220
      %v1222 = vpop.f32.mrb[0].mxu0
      %v1223 = vadd.f32 %v1121, %v1222
      %v1224 = vpop.f32.mrb[0].mxu0
      %v1225 = vadd.f32 %v1117, %v1224
      %v1226 = vpop.f32.mrb[0].mxu0
      %v1227 = vadd.f32 %v1121, %v1226
      %1228 = vdwg.mxu0
      %v1229 = vmax.f32 %v1191, 0.0
      %v1230 = vmax.f32 %v1193, 0.0
      %v1231 = vmax.f32 %v1195, 0.0
      %v1232 = vmax.f32 %v1197, 0.0
      %v1233 = vmax.f32 %v1201, 0.0
      %v1234 = vmax.f32 %v1203, 0.0
      %v1235 = vmax.f32 %v1205, 0.0
      %v1236 = vmax.f32 %v1207, 0.0
      %v1237 = vmax.f32 %v1211, 0.0
      %v1238 = vmax.f32 %v1213, 0.0
      %v1239 = vmax.f32 %v1215, 0.0
      %v1240 = vmax.f32 %v1217, 0.0
      %v1241 = vmax.f32 %v1221, 0.0
      %v1242 = vmax.f32 %v1223, 0.0
      %v1243 = vmax.f32 %v1225, 0.0
      %v1244 = vmax.f32 %v1227, 0.0
      %v1245 = vmul.f32 %v1229, %v1066
      %v1246 = vmul.f32 %v1230, %v1068
      %v1247 = vmul.f32 %v1231, %v1070
      %v1248 = vmul.f32 %v1232, %v1072
      %v1249 = vmul.f32 %v1233, %v1076
      %v1250 = vmul.f32 %v1234, %v1078
      %v1251 = vmul.f32 %v1235, %v1080
      %v1252 = vmul.f32 %v1236, %v1082
      %v1253 = vmul.f32 %v1237, %v1086
      %v1254 = vmul.f32 %v1238, %v1088
      %v1255 = vmul.f32 %v1239, %v1090
      %v1256 = vmul.f32 %v1240, %v1092
      %v1257 = vmul.f32 %v1241, %v1096
      %v1258 = vmul.f32 %v1242, %v1098
      %v1259 = vmul.f32 %v1243, %v1100
      %v1260 = vmul.f32 %v1244, %v1102
      %v1261 = vpack.c.bf16 %v1247, %v1245
      %v1262 = vpack.c.bf16 %v1248, %v1246
      %v1263 = vpack.c.bf16 %v1251, %v1249
      %v1264 = vpack.c.bf16 %v1252, %v1250
      %v1265 = vpack.c.bf16 %v1255, %v1253
      %v1266 = vpack.c.bf16 %v1256, %v1254
      %v1267 = vpack.c.bf16 %v1259, %v1257
      %v1268 = vpack.c.bf16 %v1260, %v1258
      %v1269 = vld [vmem:[%s5] sm:$0xf]
      %v1270 = vld [vmem:[%s5 + $0x4] sm:$0xf]
      %v1271 = vld [vmem:[%s5 + $0x8] sm:$0xf]
      %v1272 = vld [vmem:[%s5 + $0xc] sm:$0xf]
      %v1273 = vld [vmem:[%s5 + $0x10] sm:$0xf]
      %v1274 = vld [vmem:[%s5 + $0x14] sm:$0xf]
      %v1275 = vld [vmem:[%s5 + $0x18] sm:$0xf]
      %v1276 = vld [vmem:[%s5 + $0x1c] sm:$0xf]
      %v1277 = vld [vmem:[%s5 + $0x20] sm:$0xf]
      %v1278 = vld [vmem:[%s5 + $0x24] sm:$0xf]
      %v1279 = vld [vmem:[%s5 + $0x28] sm:$0xf]
      %v1280 = vld [vmem:[%s5 + $0x2c] sm:$0xf]
      %v1281 = vld [vmem:[%s5 + $0x30] sm:$0xf]
      %v1282 = vld [vmem:[%s5 + $0x34] sm:$0xf]
      %v1283 = vld [vmem:[%s5 + $0x38] sm:$0xf]
      %v1284 = vld [vmem:[%s5 + $0x3c] sm:$0xf]
      %v1285 = vld [vmem:[%s5 + $0x40] sm:$0xf]
      %v1286 = vld [vmem:[%s5 + $0x44] sm:$0xf]
      %v1287 = vld [vmem:[%s5 + $0x48] sm:$0xf]
      %v1288 = vld [vmem:[%s5 + $0x4c] sm:$0xf]
      %v1289 = vld [vmem:[%s5 + $0x50] sm:$0xf]
      %v1290 = vld [vmem:[%s5 + $0x54] sm:$0xf]
      %v1291 = vld [vmem:[%s5 + $0x58] sm:$0xf]
      %v1292 = vld [vmem:[%s5 + $0x5c] sm:$0xf]
      %v1293 = vld [vmem:[%s5 + $0x60] sm:$0xf]
      %v1294 = vld [vmem:[%s5 + $0x64] sm:$0xf]
      %v1295 = vld [vmem:[%s5 + $0x68] sm:$0xf]
      %v1296 = vld [vmem:[%s5 + $0x6c] sm:$0xf]
      %v1297 = vld [vmem:[%s5 + $0x70] sm:$0xf]
      %v1298 = vld [vmem:[%s5 + $0x74] sm:$0xf]
      %v1299 = vld [vmem:[%s5 + $0x78] sm:$0xf]
      %v1300 = vld [vmem:[%s5 + $0x7c] sm:$0xf]
      %v1301 = vld [vmem:[%s6] sm:$0xf]
      %v1303 = vsel %vm459, %v983, 0
      %v1306 = vsel %vm459, %v985, 0
      %v1309 = vsel %vm459, %v987, 0
      %v1312 = vsel %vm459, %v989, 0
      %v1315 = vsel %vm459, %v991, 0
      %v1318 = vsel %vm459, %v993, 0
      %v1321 = vsel %vm459, %v995, 0
      %v1324 = vsel %vm459, %v997, 0
      %vm1326 = vcmask 1043456
      %v1328 = vsel %vm1326, %v1301, 0
      %1330 = vmatprep.subr.mxu0 0.0
      %1331 = vmatpush1.msra.mxu0 %v1328
      %1332 = vmatprep.subr.mxu0 0.0
      %1333 = vmatpush1.msra.mxu0 0.0
      %1334 = vmatprep.subr.mxu0 0.0
      %1335 = vmatpush1.msra.mxu0 0.0
      %1336 = vmatprep.subr.mxu0 0.0
      %1337 = vmatpush1.msra.mxu0 0.0
      %1338 = vmatprep.subr.mxu0 0.0
      %1339 = vmatpush1.msra.mxu0 0.0
      %1340 = vmatprep.subr.mxu0 0.0
      %1341 = vmatpush1.msra.mxu0 0.0
      %1342 = vmatprep.subr.mxu0 0.0
      %1343 = vmatpush1.msra.mxu0 0.0
      %1344 = vmatprep.subr.mxu0 0.0
      %1345 = vmatpush1.msra.mxu0 0.0
      %1346 = vmatprep.subr.mxu0 0.0
      %1347 = vmatpush1.msra.mxu0 0.0
      %1348 = vmatprep.subr.mxu0 0.0
      %1349 = vmatpush1.msra.mxu0 0.0
      %1350 = vmatprep.subr.mxu0 0.0
      %1351 = vmatpush1.msra.mxu0 0.0
      %1352 = vmatprep.subr.mxu0 0.0
      %1353 = vmatpush1.msra.mxu0 0.0
      %1354 = vmatprep.subr.mxu0 0.0
      %1355 = vmatpush1.msra.mxu0 0.0
      %1356 = vmatprep.subr.mxu0 0.0
      %1357 = vmatpush1.msra.mxu0 0.0
      %1358 = vmatprep.subr.mxu0 0.0
      %1359 = vmatpush1.msra.mxu0 0.0
      %1360 = vmatprep.subr.mxu0 0.0
      %1361 = vmatpush1.msra.mxu0 0.0
      %1362 = vmatprep.subr.mxu0 0.0
      %1363 = vmatpush1.msra.mxu0 0.0
      %1364 = vmatprep.subr.mxu0 0.0
      %1365 = vmatpush1.msra.mxu0 0.0
      %1366 = vmatprep.subr.mxu0 0.0
      %1367 = vmatpush1.msra.mxu0 0.0
      %1368 = vmatprep.subr.mxu0 0.0
      %1369 = vmatpush1.msra.mxu0 0.0
      %1370 = vmatprep.subr.mxu0 0.0
      %1371 = vmatpush1.msra.mxu0 0.0
      %1372 = vmatprep.subr.mxu0 0.0
      %1373 = vmatpush1.msra.mxu0 0.0
      %1374 = vmatprep.subr.mxu0 0.0
      %1375 = vmatpush1.msra.mxu0 0.0
      %1376 = vmatprep.subr.mxu0 0.0
      %1377 = vmatpush1.msra.mxu0 0.0
      %1378 = vmatprep.subr.mxu0 0.0
      %1379 = vmatpush1.msra.mxu0 0.0
      %1380 = vmatprep.subr.mxu0 0.0
      %1381 = vmatpush1.msra.mxu0 0.0
      %1382 = vmatprep.subr.mxu0 0.0
      %1383 = vmatpush1.msra.mxu0 0.0
      %1384 = vmatprep.subr.mxu0 0.0
      %1385 = vmatpush1.msra.mxu0 0.0
      %1386 = vmatprep.subr.mxu0 0.0
      %1387 = vmatpush1.msra.mxu0 0.0
      %1388 = vmatprep.subr.mxu0 0.0
      %1389 = vmatpush1.msra.mxu0 0.0
      %1390 = vmatprep.subr.mxu0 0.0
      %1391 = vmatpush1.msra.mxu0 0.0
      %1392 = vmatprep.subr.mxu0 0.0
      %1393 = vmatpush1.msra.mxu0 0.0
      %1394 = vmatprep.mubr.f32.mxu0 0.0
      %1395 = vmatmul.mubr.f32.gmra.mrb[0].mxu0 %v1303
      %v1396 = vpop.f32.mrb[0].mxu0
      %v1397 = vadd.f32 0.0, %v1396
      %v1398 = vpop.f32.mrb[0].mxu0
      %1399 = vmatprep.mubr.f32.mxu0 0.0
      %1400 = vmatmul.mubr.f32.gmra.mrb[0].mxu0 %v1306
      %v1401 = vpop.f32.mrb[0].mxu0
      %v1402 = vadd.f32 0.0, %v1401
      %v1403 = vpop.f32.mrb[0].mxu0
      %1404 = vmatprep.mubr.f32.mxu0 0.0
      %1405 = vmatmul.mubr.f32.gmra.mrb[0].mxu0 %v1309
      %v1406 = vpop.f32.mrb[0].mxu0
      %v1407 = vadd.f32 0.0, %v1406
      %v1408 = vpop.f32.mrb[0].mxu0
      %1409 = vmatprep.mubr.f32.mxu0 0.0
      %1410 = vmatmul.mubr.f32.gmra.mrb[0].mxu0 %v1312
      %v1411 = vpop.f32.mrb[0].mxu0
      %v1412 = vadd.f32 0.0, %v1411
      %v1413 = vpop.f32.mrb[0].mxu0
      %1414 = vmatprep.mubr.f32.mxu0 0.0
      %1415 = vmatmul.mubr.f32.gmra.mrb[0].mxu0 %v1315
      %v1416 = vpop.f32.mrb[0].mxu0
      %v1417 = vadd.f32 0.0, %v1416
      %v1418 = vpop.f32.mrb[0].mxu0
      %1419 = vmatprep.mubr.f32.mxu0 0.0
      %1420 = vmatmul.mubr.f32.gmra.mrb[0].mxu0 %v1318
      %v1421 = vpop.f32.mrb[0].mxu0
      %v1422 = vadd.f32 0.0, %v1421
      %v1423 = vpop.f32.mrb[0].mxu0
      %1424 = vmatprep.mubr.f32.mxu0 0.0
      %1425 = vmatmul.mubr.f32.gmra.mrb[0].mxu0 %v1321
      %v1426 = vpop.f32.mrb[0].mxu0
      %v1427 = vadd.f32 0.0, %v1426
      %v1428 = vpop.f32.mrb[0].mxu0
      %1429 = vmatprep.mubr.f32.mxu0 0.0
      %1430 = vmatmul.mubr.f32.gmra.mrb[0].mxu0 %v1324
      %v1431 = vpop.f32.mrb[0].mxu0
      %v1432 = vadd.f32 0.0, %v1431
      %v1433 = vpop.f32.mrb[0].mxu0
      %1434 = vdwg.mxu0
      %v1467 = vunpack.c.l.b16 %v1269
      %v1468 = vunpack.c.l.b16 %v1270
      %v1469 = vunpack.c.l.b16 %v1271
      %v1470 = vunpack.c.l.b16 %v1272
      %v1471 = vunpack.c.l.b16 %v1273
      %v1472 = vunpack.c.l.b16 %v1274
      %v1473 = vunpack.c.l.b16 %v1275
      %v1474 = vunpack.c.l.b16 %v1276
      %v1475 = vunpack.c.l.b16 %v1277
      %v1476 = vunpack.c.l.b16 %v1278
      %v1477 = vunpack.c.l.b16 %v1279
      %v1478 = vunpack.c.l.b16 %v1280
      %v1479 = vunpack.c.l.b16 %v1281
      %v1480 = vunpack.c.l.b16 %v1282
      %v1481 = vunpack.c.l.b16 %v1283
      %v1482 = vunpack.c.l.b16 %v1284
      %v1483 = vunpack.c.l.b16 %v1285
      %v1484 = vunpack.c.l.b16 %v1286
      %v1485 = vunpack.c.l.b16 %v1287
      %v1486 = vunpack.c.l.b16 %v1288
      %v1487 = vunpack.c.l.b16 %v1289
      %v1488 = vunpack.c.l.b16 %v1290
      %v1489 = vunpack.c.l.b16 %v1291
      %v1490 = vunpack.c.l.b16 %v1292
      %v1491 = vunpack.c.l.b16 %v1293
      %v1492 = vunpack.c.l.b16 %v1294
      %v1493 = vunpack.c.l.b16 %v1295
      %v1494 = vunpack.c.l.b16 %v1296
      %v1495 = vunpack.c.l.b16 %v1297
      %v1496 = vunpack.c.l.b16 %v1298
      %v1497 = vunpack.c.l.b16 %v1299
      %v1498 = vunpack.c.l.b16 %v1300
      %v1499 = vpack.c.b16 %v1468, %v1467
      %v1500 = vpack.c.b16 %v1470, %v1469
      %v1501 = vpack.c.b16 %v1472, %v1471
      %v1502 = vpack.c.b16 %v1474, %v1473
      %v1503 = vpack.c.b16 %v1476, %v1475
      %v1504 = vpack.c.b16 %v1478, %v1477
      %v1505 = vpack.c.b16 %v1480, %v1479
      %v1506 = vpack.c.b16 %v1482, %v1481
      %v1507 = vpack.c.b16 %v1484, %v1483
      %v1508 = vpack.c.b16 %v1486, %v1485
      %v1509 = vpack.c.b16 %v1488, %v1487
      %v1510 = vpack.c.b16 %v1490, %v1489
      %v1511 = vpack.c.b16 %v1492, %v1491
      %v1512 = vpack.c.b16 %v1494, %v1493
      %v1513 = vpack.c.b16 %v1496, %v1495
      %v1514 = vpack.c.b16 %v1498, %v1497
      %1531 = vmatprep.subr.bf16.mxu0 0
      %1532 = vmatpush1.bf16.msra.mxu0 %v1499
      %1533 = vmatprep.subr.bf16.mxu0 0
      %1534 = vmatpush1.bf16.msra.mxu0 %v1500
      %1535 = vmatprep.subr.bf16.mxu0 0
      %1536 = vmatpush1.bf16.msra.mxu0 %v1501
      %1537 = vmatprep.subr.bf16.mxu0 0
      %1538 = vmatpush1.bf16.msra.mxu0 %v1502
      %1539 = vmatprep.subr.bf16.mxu0 0
      %1540 = vmatpush1.bf16.msra.mxu0 %v1503
      %1541 = vmatprep.subr.bf16.mxu0 0
      %1542 = vmatpush1.bf16.msra.mxu0 %v1504
      %1543 = vmatprep.subr.bf16.mxu0 0
      %1544 = vmatpush1.bf16.msra.mxu0 %v1505
      %1545 = vmatprep.subr.bf16.mxu0 0
      %1546 = vmatpush1.bf16.msra.mxu0 %v1506
      %1547 = vmatprep.subr.bf16.mxu0 0
      %1548 = vmatpush1.bf16.msra.mxu0 %v1507
      %1549 = vmatprep.subr.bf16.mxu0 0
      %1550 = vmatpush1.bf16.msra.mxu0 %v1508
      %1551 = vmatprep.subr.bf16.mxu0 0
      %1552 = vmatpush1.bf16.msra.mxu0 %v1509
      %1553 = vmatprep.subr.bf16.mxu0 0
      %1554 = vmatpush1.bf16.msra.mxu0 %v1510
      %1555 = vmatprep.subr.bf16.mxu0 0
      %1556 = vmatpush1.bf16.msra.mxu0 %v1511
      %1557 = vmatprep.subr.bf16.mxu0 0
      %1558 = vmatpush1.bf16.msra.mxu0 %v1512
      %1559 = vmatprep.subr.bf16.mxu0 0
      %1560 = vmatpush1.bf16.msra.mxu0 %v1513
      %1561 = vmatprep.subr.bf16.mxu0 0
      %1562 = vmatpush1.bf16.msra.mxu0 %v1514
      %1563 = vmatprep.mubr.bf16.mxu0 %v1262
      %1564 = vmatmul.mubr.bf16.gmra.mrb[0].mxu0 %v1261
      %v1565 = vpop.f32.mrb[0].mxu0
      %v1566 = vadd.f32 %v1397, %v1565
      %v1567 = vpop.f32.mrb[0].mxu0
      %v1568 = vpop.f32.mrb[0].mxu0
      %v1569 = vadd.f32 %v1402, %v1568
      %v1570 = vpop.f32.mrb[0].mxu0
      %1571 = vmatprep.mubr.bf16.mxu0 %v1264
      %1572 = vmatmul.mubr.bf16.gmra.mrb[0].mxu0 %v1263
      %v1573 = vpop.f32.mrb[0].mxu0
      %v1574 = vadd.f32 %v1407, %v1573
      %v1575 = vpop.f32.mrb[0].mxu0
      %v1576 = vpop.f32.mrb[0].mxu0
      %v1577 = vadd.f32 %v1412, %v1576
      %v1578 = vpop.f32.mrb[0].mxu0
      %1579 = vmatprep.mubr.bf16.mxu0 %v1266
      %1580 = vmatmul.mubr.bf16.gmra.mrb[0].mxu0 %v1265
      %v1581 = vpop.f32.mrb[0].mxu0
      %v1582 = vadd.f32 %v1417, %v1581
      %v1583 = vpop.f32.mrb[0].mxu0
      %v1584 = vpop.f32.mrb[0].mxu0
      %v1585 = vadd.f32 %v1422, %v1584
      %v1586 = vpop.f32.mrb[0].mxu0
      %1587 = vmatprep.mubr.bf16.mxu0 %v1268
      %1588 = vmatmul.mubr.bf16.gmra.mrb[0].mxu0 %v1267
      %v1589 = vpop.f32.mrb[0].mxu0
      %v1590 = vadd.f32 %v1427, %v1589
      %v1591 = vpop.f32.mrb[0].mxu0
      %v1592 = vpop.f32.mrb[0].mxu0
      %v1593 = vadd.f32 %v1432, %v1592
      %v1594 = vpop.f32.mrb[0].mxu0
      %1595 = vdwg.mxu0
      %1596 = vst.msk [vmem:[%s307] sm:$0xff] %vm329, %v1566
      %1597 = vst.msk [vmem:[%s307 + $0x8] sm:$0xff] %vm329, %v1569
      %1598 = vst.msk [vmem:[%s307 + $0x10] sm:$0xff] %vm329, %v1574
      %1599 = vst.msk [vmem:[%s307 + $0x18] sm:$0xff] %vm329, %v1577
      %1600 = vst.msk [vmem:[%s307 + $0x20] sm:$0xff] %vm329, %v1582
      %1601 = vst.msk [vmem:[%s307 + $0x28] sm:$0xff] %vm329, %v1585
      %1602 = vst.msk [vmem:[%s307 + $0x30] sm:$0xff] %vm329, %v1590
      %1603 = vst.msk [vmem:[%s307 + $0x38] sm:$0xff] %vm329, %v1593
      %s1604 = smul.u32 8, %s19
      %p1605 = scmp.lt.s32.totalorder %s1604, 31
      %s1606 = scalar_select %p1605, %s1604, 31
      %s1607 = smul.addr %s1606, 8
      %s1608 = scalar_lea.vmem %s8, %s1607
      // Predicated region
      $region53: #{sparse_moe.1} parent=51 // pred_check
        %p1609 = pneg %p210
      $region54: #{sparse_moe.1} parent=51 // pred_check_branch
        %1611 = sbr.rel (%p1609) target = $region56
      $region55: #{sparse_moe.1} parent=51 // pred_region
        %s1612 = smul.u32 8, %s19
      $region56: #{sparse_moe.1} parent=51 // pred_fallthru
        _
    $region52: #{sparse_moe.1} parent=5 // pred_fallthru
      _
    %p1613 = scmp.le.s32.totalorder 2, %s14
    // Predicated region
    $region57: #{sparse_moe.1} parent=5 // pred_check
      %p1614 = pneg %p1613
    $region58: #{sparse_moe.1} parent=5 // pred_check_branch
      %1616 = sbr.rel (%p1614) target = $region60
    $region59: #{sparse_moe.1} parent=5 // pred_region
      %s1617 = ssub.s32 %s14, 2
      // Predicated region
      $region61: #{sparse_moe.1} parent=59 // pred_check
        %p1618 = pneg %p216
      $region62: #{sparse_moe.1} parent=59 // pred_check_branch
        %1620 = sbr.rel (%p1618) target = $region64
      $region63: #{sparse_moe.1} parent=59 // pred_region
        %s1621 = smul.u32 8, %s20
        %p1622 = scmp.lt.s32.totalorder %s1621, 31
        %s1623 = scalar_select %p1622, %s1621, 31
        %s1624 = smul.addr %s1623, 8
        %s1625 = scalar_lea.vmem %s8, %s1624
      $region64: #{sparse_moe.1} parent=59 // pred_fallthru
        _
    $region60: #{sparse_moe.1} parent=5 // pred_fallthru
      _
  $region6: #{sparse_moe.1} parent=0 // loop_footer
    %s18 = sadd.s32 1, %s14
  $region7: #{sparse_moe.1} parent=0 // loop_footer_branch
    %13 = sbr.rel target = $region3
  $region8: #{sparse_moe.1} parent=0 // loop_exit
    _

</llo_original>
